<compile_context>
chip_gen: v7x
topology: tpu7x:2x2x1
jax: 0.10.0
libtpu: 0.0.40
codegen_flags: <defaults>
</compile_context>

<pallas_src>
import jax
import jax.numpy as jnp
from functools import partial
from jax.experimental import pallas as pl
from jax.experimental.pallas import tpu as pltpu

WORD_SIZE   = 50
EMBED_DIM   = 16
HIDDEN_DIM  = 32
OUTPUT_SIZE = 10
NUM_LAYERS  = 2

H       = HIDDEN_DIM
GP      = 128            # per-gate lane block (128-lane aligned)
HID_PAD = GP             # padded width of the per-layer [h_f | h_b] block
FC_PAD  = 128            # lane-dense fc output slab; logits sliced in wrapper


# ----------------------------- fused Pallas kernel -----------------------------

def _gru_seq_kernel(tok_ref,                       # scalar-prefetch (SMEM): (T,)
                    embed_ref, h0_ref,
                    wih0_ref, whh0_ref, bi0_ref, bhn0_ref,
                    wih1_ref, whh1_ref, bi1_ref, bhn1_ref,
                    wfc_ref, bfc_ref,
                    logits_ref, hout_ref):
    """One token step per grid iteration; weights stay VMEM-resident.

    Packed per-layer layout (lane-aligned gate blocks of width GP=128):
      w_ih : (In_pad, 3*GP)  gate block g columns = [g_f(32) | g_b(32) | 0...]
      w_hh : (HID_PAD, 3*GP) block-diagonal per direction inside each gate block
      b_i  : (1, 3*GP)       r/z slots hold b_ih+b_hh; n slot holds b_in only
      b_hn : (1, GP)         hidden-side n bias (scaled by r, kept separate)
    Hidden carry lives in hout_ref (constant-index output block => resident).
    """
    t = pl.program_id(0)

    @pl.when(t == 0)
    def _():
        hout_ref[...] = h0_ref[...]            # init carry from input hidden

    token = tok_ref[t]
    x = embed_ref[pl.ds(token, 1), :]          # (1, EMBED_DIM) embedding row

    def bidir_gru(x_in, hcat, wih, whh, bi, bhn):
        gi = jnp.dot(x_in, wih[...], preferred_element_type=jnp.float32) + bi[...]
        gh = jnp.dot(hcat, whh[...], preferred_element_type=jnp.float32)
        r = jax.nn.sigmoid(gi[:, 0:GP] + gh[:, 0:GP])
        z = jax.nn.sigmoid(gi[:, GP:2 * GP] + gh[:, GP:2 * GP])
        n = jnp.tanh(gi[:, 2 * GP:3 * GP] + r * (gh[:, 2 * GP:3 * GP] + bhn[...]))
        return n + z * (hcat - n)              # (1, HID_PAD) = [h'_f | h'_b | 0]

    h0 = bidir_gru(x,  hout_ref[0:1, :], wih0_ref, whh0_ref, bi0_ref, bhn0_ref)
    h1 = bidir_gru(h0, hout_ref[1:2, :], wih1_ref, whh1_ref, bi1_ref, bhn1_ref)

    hout_ref[0:1, :] = h0
    hout_ref[1:2, :] = h1
    logits_ref[pl.ds(t, 1), :] = (jnp.dot(h1, wfc_ref[...],
                                          preferred_element_type=jnp.float32)
                                  + bfc_ref[...])


def gru_rnn_decode(fused, tokens, hidden):
    """tokens: int32 (T,).  hidden: (2L, 1, H) PyTorch order.
       Returns per-step logits (T, OUTPUT_SIZE) and final hidden (2L, 1, H)."""
    T = int(tokens.shape[0])
    h_pad = (jnp.zeros((NUM_LAYERS, HID_PAD), jnp.float32)
             .at[:, :2 * H].set(hidden.reshape(NUM_LAYERS, 2 * H)))

    def c2(shape):  # constant-index 2-D block: fetched once, VMEM-resident
        return pl.BlockSpec(shape, lambda t, tok: (0, 0))

    grid_spec = pltpu.PrefetchScalarGridSpec(
        num_scalar_prefetch=1,
        grid=(T,),
        in_specs=[
            c2((WORD_SIZE, EMBED_DIM)),                       # embedding table
            c2((NUM_LAYERS, HID_PAD)),                        # initial hidden
            c2((EMBED_DIM, 3 * GP)), c2((HID_PAD, 3 * GP)),   # layer 0
            c2((1, 3 * GP)), c2((1, GP)),
            c2((HID_PAD, 3 * GP)), c2((HID_PAD, 3 * GP)),     # layer 1
            c2((1, 3 * GP)), c2((1, GP)),
            c2((HID_PAD, FC_PAD)), c2((1, FC_PAD)),           # fc
        ],
        out_specs=(
            pl.BlockSpec((T, FC_PAD), lambda t, tok: (0, 0)),           # logits
            pl.BlockSpec((NUM_LAYERS, HID_PAD), lambda t, tok: (0, 0)),  # hidden carry
        ),
    )

    logits_pad, hout_pad = pl.pallas_call(
        _gru_seq_kernel,
        out_shape=(jax.ShapeDtypeStruct((T, FC_PAD), jnp.float32),
                   jax.ShapeDtypeStruct((NUM_LAYERS, HID_PAD), jnp.float32)),
        grid_spec=grid_spec,
        compiler_params=pltpu.CompilerParams(
            dimension_semantics=("arbitrary",)),   # serial recurrence over time
    )(tokens.astype(jnp.int32), fused["embed"], h_pad,
      *fused["gru"][0], *fused["gru"][1],
      fused["w_fc"], fused["b_fc"])

    logits = logits_pad[:, :OUTPUT_SIZE]
    hidden_out = hout_pad[:, :2 * H].reshape(NUM_LAYERS * 2, 1, H)
    return logits, hidden_out


def gru_rnn_forward(fused, features, hidden):
    """Single-token forward matching the PyTorch module signature."""
    tokens = features.reshape(-1)[:1].astype(jnp.int32)
    logits, hidden_out = gru_rnn_decode(fused, tokens, hidden)
    return logits, hidden_out


# ------------------------- parameters (raw + packed) ---------------------------

def init_raw_params(key):
    """Raw weights in PyTorch GRU layout: w_ih (3H,In), w_hh (3H,H), b_* (3H,)."""
    def u(k, shape, scale):
        return jax.random.uniform(k, shape, jnp.float32, -scale, scale)

    params = {}
    key, k_embed = jax.random.split(key)
    params["embed"] = jax.random.normal(k_embed, (WORD_SIZE, EMBED_DIM), jnp.float32)

    kscale = 1.0 / float(HIDDEN_DIM ** 0.5)
    gru = []
    for l in range(NUM_LAYERS):
        in_dim = EMBED_DIM if l == 0 else 2 * HIDDEN_DIM      # bidirectional stack
        layer = {}
        for d in ("fwd", "bwd"):
            key, k1, k2, k3, k4 = jax.random.split(key, 5)
            layer[d] = (u(k1, (3 * H, in_dim), kscale),
                        u(k2, (3 * H, H), kscale),
                        u(k3, (3 * H,), kscale),
                        u(k4, (3 * H,), kscale))
        gru.append(layer)
    params["gru"] = gru

    key, kf1, kf2 = jax.random.split(key, 3)
    kfc = 1.0 / float((2 * HIDDEN_DIM) ** 0.5)
    params["w_fc"] = u(kf1, (OUTPUT_SIZE, 2 * H), kfc)
    params["b_fc"] = u(kf2, (OUTPUT_SIZE,), kfc)
    return params


def _pack_layer(fwd, bwd, in_dim, in_pad):
    w_ih_f, w_hh_f, b_ih_f, b_hh_f = fwd
    w_ih_b, w_hh_b, b_ih_b, b_hh_b = bwd
    wit_f, wit_b = w_ih_f.T, w_ih_b.T                         # (in_dim, 3H)
    wht_f, wht_b = w_hh_f.T, w_hh_b.T                         # (H, 3H)

    w_ih = jnp.zeros((in_pad, 3 * GP), jnp.float32)
    w_hh = jnp.zeros((HID_PAD, 3 * GP), jnp.float32)
    b_i  = jnp.zeros((1, 3 * GP), jnp.float32)
    b_hn = jnp.zeros((1, GP), jnp.float32)

    def seg(b, g):
        return b[g * H:(g + 1) * H]

    for g in range(3):
        c = g * GP
        w_ih = w_ih.at[:in_dim, c:c + H].set(wit_f[:, g * H:(g + 1) * H])
        w_ih = w_ih.at[:in_dim, c + H:c + 2 * H].set(wit_b[:, g * H:(g + 1) * H])
        # block-diagonal hidden weights: rows 0:H act on h_f, rows H:2H on h_b
        w_hh = w_hh.at[0:H, c:c + H].set(wht_f[:, g * H:(g + 1) * H])
        w_hh = w_hh.at[H:2 * H, c + H:c + 2 * H].set(wht_b[:, g * H:(g + 1) * H])
        if g < 2:   # r, z gates: pre-sum input- and hidden-side biases
            b_i = b_i.at[0, c:c + H].set(seg(b_ih_f, g) + seg(b_hh_f, g))
            b_i = b_i.at[0, c + H:c + 2 * H].set(seg(b_ih_b, g) + seg(b_hh_b, g))
        else:       # n gate: input bias only (hidden-side bias is scaled by r)
            b_i = b_i.at[0, c:c + H].set(seg(b_ih_f, g))
            b_i = b_i.at[0, c + H:c + 2 * H].set(seg(b_ih_b, g))
    b_hn = b_hn.at[0, 0:H].set(seg(b_hh_f, 2)).at[0, H:2 * H].set(seg(b_hh_b, 2))
    return w_ih, w_hh, b_i, b_hn


def pack_params(raw):
    fused = {"embed": raw["embed"]}
    fused["gru"] = [
        _pack_layer(raw["gru"][0]["fwd"], raw["gru"][0]["bwd"], EMBED_DIM, EMBED_DIM),
        _pack_layer(raw["gru"][1]["fwd"], raw["gru"][1]["bwd"], 2 * H, HID_PAD),
    ]
    fused["w_fc"] = (jnp.zeros((HID_PAD, FC_PAD), jnp.float32)
                     .at[:2 * H, :OUTPUT_SIZE].set(raw["w_fc"].T))
    fused["b_fc"] = (jnp.zeros((1, FC_PAD), jnp.float32)
                     .at[:, :OUTPUT_SIZE].set(raw["b_fc"]))
    return fused


# ----------------------------- pure-JAX reference ------------------------------

def _ref_cell(x, h, w_ih, w_hh, b_ih, b_hh):
    gi = x @ w_ih.T + b_ih
    gh = h @ w_hh.T + b_hh
    r = jax.nn.sigmoid(gi[:, :H] + gh[:, :H])
    z = jax.nn.sigmoid(gi[:, H:2 * H] + gh[:, H:2 * H])
    n = jnp.tanh(gi[:, 2 * H:] + r * gh[:, 2 * H:])
    return (1.0 - z) * n + z * h


def reference_forward(raw, features, hidden):
    emb = jnp.take(raw["embed"], features.reshape(-1)[:1], axis=0)
    layer_in = emb
    new_hidden = []
    for l in range(NUM_LAYERS):
        hf = _ref_cell(layer_in, hidden[2 * l],     *raw["gru"][l]["fwd"])
        hb = _ref_cell(layer_in, hidden[2 * l + 1], *raw["gru"][l]["bwd"])
        new_hidden += [hf, hb]
        layer_in = jnp.concatenate([hf, hb], axis=-1)
    out = layer_in @ raw["w_fc"].T + raw["b_fc"]
    return out, jnp.stack(new_hidden, axis=0)


# ----------------------------------- main --------------------------------------

if __name__ == "__main__":
    key = jax.random.PRNGKey(0)
    raw = init_raw_params(key)
    fused = pack_params(raw)

    decode = jax.jit(partial(gru_rnn_decode, fused))      # whole sequence, 1 launch
    step   = jax.jit(partial(gru_rnn_forward, fused))     # PyTorch-style single step

    T = 8
    tokens = jax.random.randint(jax.random.PRNGKey(1), (T,), 0, WORD_SIZE,
                                dtype=jnp.int32)
    hidden0 = jnp.zeros((NUM_LAYERS * 2, 1, HIDDEN_DIM), jnp.float32)

    # full-sequence decode in one kernel launch, then one extra single-token
    # step (exercises both the seq path and the module-signature path).
    logits_seq, h_final = decode(tokens, hidden0)
    extra_tok = jnp.array([5], dtype=jnp.int32)
    out_step, h_step = step(extra_tok, h_final)
    logits_seq, h_final, out_step, h_step = jax.block_until_ready(
        (logits_seq, h_final, out_step, h_step))

    # pure-JAX reference: the same per-token recurrence
    r_hidden = hidden0
    r_logits = []
    for t in range(T):
        o, r_hidden = reference_forward(raw, tokens[t:t + 1], r_hidden)
        r_logits.append(o)
    r_logits = jnp.concatenate(r_logits, axis=0)
    r_out_step, r_h_step = reference_forward(raw, extra_tok, r_hidden)

    assert logits_seq.shape == (T, OUTPUT_SIZE)
    assert h_final.shape == (NUM_LAYERS * 2, 1, HIDDEN_DIM)
    assert out_step.shape == (1, OUTPUT_SIZE)
    assert jnp.allclose(logits_seq, r_logits, atol=1e-3, rtol=1e-3)
    assert jnp.allclose(h_final, r_hidden, atol=1e-3, rtol=1e-3)
    assert jnp.allclose(out_step, r_out_step, atol=1e-3, rtol=1e-3)
    assert jnp.allclose(h_step, r_h_step, atol=1e-3, rtol=1e-3)

    print("KERNEL_OK")
</pallas_src>

<mosaic_0001>
module attributes {stable_mosaic.version = 11 : i64} {
  func.func @_gru_seq_kernel(%arg0: i32, %arg1: memref<8xi32, #tpu.memory_space<smem>>, %arg2: memref<50x16xf32, #tpu.memory_space<vmem>>, %arg3: memref<2x128xf32, #tpu.memory_space<vmem>>, %arg4: memref<16x384xf32, #tpu.memory_space<vmem>>, %arg5: memref<128x384xf32, #tpu.memory_space<vmem>>, %arg6: memref<1x384xf32, #tpu.memory_space<vmem>>, %arg7: memref<1x128xf32, #tpu.memory_space<vmem>>, %arg8: memref<128x384xf32, #tpu.memory_space<vmem>>, %arg9: memref<128x384xf32, #tpu.memory_space<vmem>>, %arg10: memref<1x384xf32, #tpu.memory_space<vmem>>, %arg11: memref<1x128xf32, #tpu.memory_space<vmem>>, %arg12: memref<128x128xf32, #tpu.memory_space<vmem>>, %arg13: memref<1x128xf32, #tpu.memory_space<vmem>>, %arg14: memref<8x128xf32, #tpu.memory_space<vmem>>, %arg15: memref<2x128xf32, #tpu.memory_space<vmem>>) attributes {dimension_semantics = [#tpu.dimension_semantics<arbitrary>], iteration_bounds = array<i64: 8>, scalar_prefetch = 1 : i64, scratch_operands = 0 : i64, tpu.core_type = #tpu.core_type<tc>, window_params = [{pipeline_mode = #tpu.pipeline_mode<synchronous>, transform_indices = @transform_0, window_bounds = array<i64: 50, 16>}, {pipeline_mode = #tpu.pipeline_mode<synchronous>, transform_indices = @transform_1, window_bounds = array<i64: 2, 128>}, {pipeline_mode = #tpu.pipeline_mode<synchronous>, transform_indices = @transform_2, window_bounds = array<i64: 16, 384>}, {pipeline_mode = #tpu.pipeline_mode<synchronous>, transform_indices = @transform_3, window_bounds = array<i64: 128, 384>}, {pipeline_mode = #tpu.pipeline_mode<synchronous>, transform_indices = @transform_4, window_bounds = array<i64: 1, 384>}, {pipeline_mode = #tpu.pipeline_mode<synchronous>, transform_indices = @transform_5, window_bounds = array<i64: 1, 128>}, {pipeline_mode = #tpu.pipeline_mode<synchronous>, transform_indices = @transform_6, window_bounds = array<i64: 128, 384>}, {pipeline_mode = #tpu.pipeline_mode<synchronous>, transform_indices = @transform_7, window_bounds = array<i64: 128, 384>}, {pipeline_mode = #tpu.pipeline_mode<synchronous>, transform_indices = @transform_8, window_bounds = array<i64: 1, 384>}, {pipeline_mode = #tpu.pipeline_mode<synchronous>, transform_indices = @transform_9, window_bounds = array<i64: 1, 128>}, {pipeline_mode = #tpu.pipeline_mode<synchronous>, transform_indices = @transform_10, window_bounds = array<i64: 128, 128>}, {pipeline_mode = #tpu.pipeline_mode<synchronous>, transform_indices = @transform_11, window_bounds = array<i64: 1, 128>}, {pipeline_mode = #tpu.pipeline_mode<synchronous>, transform_indices = @transform_12, window_bounds = array<i64: 8, 128>}, {pipeline_mode = #tpu.pipeline_mode<synchronous>, transform_indices = @transform_13, window_bounds = array<i64: 2, 128>}]} {
    %c0_i32 = arith.constant 0 : i32
    %0 = arith.cmpi eq, %arg0, %c0_i32 : i32
    %1 = arith.extui %0 : i1 to i32
    %c0_i32_0 = arith.constant 0 : i32
    %2 = arith.cmpi ne, %1, %c0_i32_0 : i32
    scf.if %2 {
      %c0_37 = arith.constant 0 : index
      %c0_38 = arith.constant 0 : index
      %81 = vector.load %arg3[%c0_37, %c0_38] : memref<2x128xf32, #tpu.memory_space<vmem>>, vector<2x128xf32>
      %c0_39 = arith.constant 0 : index
      %c0_40 = arith.constant 0 : index
      %82 = vector.load %arg15[%c0_39, %c0_40] : memref<2x128xf32, #tpu.memory_space<vmem>>, vector<2x128xf32>
      tpu.vector_store %arg15[%c0_39, %c0_40], %81 {strides = array<i32>} : memref<2x128xf32, #tpu.memory_space<vmem>>, vector<2x128xf32>,
    } else {
    }
    %3 = arith.index_cast %arg0 : i32 to index
    %4 = memref.load %arg1[%3] : memref<8xi32, #tpu.memory_space<smem>>
    %5 = arith.index_cast %4 : i32 to index
    %c0 = arith.constant 0 : index
    %6 = vector.load %arg2[%5, %c0] : memref<50x16xf32, #tpu.memory_space<vmem>>, vector<1x16xf32>
    %c0_1 = arith.constant 0 : index
    %c0_2 = arith.constant 0 : index
    %7 = vector.load %arg15[%c0_1, %c0_2] : memref<2x128xf32, #tpu.memory_space<vmem>>, vector<1x128xf32>
    %c0_3 = arith.constant 0 : index
    %c0_4 = arith.constant 0 : index
    %8 = vector.load %arg4[%c0_3, %c0_4] : memref<16x384xf32, #tpu.memory_space<vmem>>, vector<16x384xf32>
    %cst = arith.constant dense<0.000000e+00> : vector<1x384xf32>
    %9 = tpu.matmul %6, %8, %cst {dimension_numbers = #tpu.dot_dimension_numbers<[1], [0], [0], [1], [0, 0, 1, 1], [], []>} : vector<1x16xf32>, vector<16x384xf32>, vector<1x384xf32> -> vector<1x384xf32>
    %c0_5 = arith.constant 0 : index
    %c0_6 = arith.constant 0 : index
    %10 = vector.load %arg6[%c0_5, %c0_6] : memref<1x384xf32, #tpu.memory_space<vmem>>, vector<1x384xf32>
    %11 = arith.addf %9, %10 : vector<1x384xf32>
    %c0_7 = arith.constant 0 : index
    %c0_8 = arith.constant 0 : index
    %12 = vector.load %arg5[%c0_7, %c0_8] : memref<128x384xf32, #tpu.memory_space<vmem>>, vector<128x384xf32>
    %cst_9 = arith.constant dense<0.000000e+00> : vector<1x384xf32>
    %13 = tpu.matmul %7, %12, %cst_9 {dimension_numbers = #tpu.dot_dimension_numbers<[1], [0], [0], [1], [0, 0, 1, 1], [], []>} : vector<1x128xf32>, vector<128x384xf32>, vector<1x384xf32> -> vector<1x384xf32>
    %14 = vector.extract_strided_slice %11 {offsets = [0, 0], sizes = [1, 128], strides = [1, 1]} : vector<1x384xf32> to vector<1x128xf32>
    %15 = vector.extract_strided_slice %13 {offsets = [0, 0], sizes = [1, 128], strides = [1, 1]} : vector<1x384xf32> to vector<1x128xf32>
    %16 = arith.addf %14, %15 : vector<1x128xf32>
    %17 = arith.negf %16 : vector<1x128xf32>
    %18 = math.exp %17 : vector<1x128xf32>
    %cst_10 = arith.constant 1.000000e+00 : f32
    %19 = vector.broadcast %cst_10 : f32 to vector<1x128xf32>
    %20 = arith.addf %19, %18 : vector<1x128xf32>
    %21 = arith.divf %19, %20 : vector<1x128xf32>
    %22 = vector.extract_strided_slice %11 {offsets = [0, 128], sizes = [1, 128], strides = [1, 1]} : vector<1x384xf32> to vector<1x128xf32>
    %23 = vector.extract_strided_slice %13 {offsets = [0, 128], sizes = [1, 128], strides = [1, 1]} : vector<1x384xf32> to vector<1x128xf32>
    %24 = arith.addf %22, %23 : vector<1x128xf32>
    %25 = arith.negf %24 : vector<1x128xf32>
    %26 = math.exp %25 : vector<1x128xf32>
    %cst_11 = arith.constant 1.000000e+00 : f32
    %27 = vector.broadcast %cst_11 : f32 to vector<1x128xf32>
    %28 = arith.addf %27, %26 : vector<1x128xf32>
    %29 = arith.divf %27, %28 : vector<1x128xf32>
    %30 = vector.extract_strided_slice %11 {offsets = [0, 256], sizes = [1, 128], strides = [1, 1]} : vector<1x384xf32> to vector<1x128xf32>
    %31 = vector.extract_strided_slice %13 {offsets = [0, 256], sizes = [1, 128], strides = [1, 1]} : vector<1x384xf32> to vector<1x128xf32>
    %c0_12 = arith.constant 0 : index
    %c0_13 = arith.constant 0 : index
    %32 = vector.load %arg7[%c0_12, %c0_13] : memref<1x128xf32, #tpu.memory_space<vmem>>, vector<1x128xf32>
    %33 = arith.addf %31, %32 : vector<1x128xf32>
    %34 = arith.mulf %21, %33 : vector<1x128xf32>
    %35 = arith.addf %30, %34 : vector<1x128xf32>
    %36 = math.tanh %35 : vector<1x128xf32>
    %37 = arith.subf %7, %36 : vector<1x128xf32>
    %38 = arith.mulf %29, %37 : vector<1x128xf32>
    %39 = arith.addf %36, %38 : vector<1x128xf32>
    %c1 = arith.constant 1 : index
    %c0_14 = arith.constant 0 : index
    %40 = vector.load %arg15[%c1, %c0_14] : memref<2x128xf32, #tpu.memory_space<vmem>>, vector<1x128xf32>
    %c0_15 = arith.constant 0 : index
    %c0_16 = arith.constant 0 : index
    %41 = vector.load %arg8[%c0_15, %c0_16] : memref<128x384xf32, #tpu.memory_space<vmem>>, vector<128x384xf32>
    %cst_17 = arith.constant dense<0.000000e+00> : vector<1x384xf32>
    %42 = tpu.matmul %39, %41, %cst_17 {dimension_numbers = #tpu.dot_dimension_numbers<[1], [0], [0], [1], [0, 0, 1, 1], [], []>} : vector<1x128xf32>, vector<128x384xf32>, vector<1x384xf32> -> vector<1x384xf32>
    %c0_18 = arith.constant 0 : index
    %c0_19 = arith.constant 0 : index
    %43 = vector.load %arg10[%c0_18, %c0_19] : memref<1x384xf32, #tpu.memory_space<vmem>>, vector<1x384xf32>
    %44 = arith.addf %42, %43 : vector<1x384xf32>
    %c0_20 = arith.constant 0 : index
    %c0_21 = arith.constant 0 : index
    %45 = vector.load %arg9[%c0_20, %c0_21] : memref<128x384xf32, #tpu.memory_space<vmem>>, vector<128x384xf32>
    %cst_22 = arith.constant dense<0.000000e+00> : vector<1x384xf32>
    %46 = tpu.matmul %40, %45, %cst_22 {dimension_numbers = #tpu.dot_dimension_numbers<[1], [0], [0], [1], [0, 0, 1, 1], [], []>} : vector<1x128xf32>, vector<128x384xf32>, vector<1x384xf32> -> vector<1x384xf32>
    %47 = vector.extract_strided_slice %44 {offsets = [0, 0], sizes = [1, 128], strides = [1, 1]} : vector<1x384xf32> to vector<1x128xf32>
    %48 = vector.extract_strided_slice %46 {offsets = [0, 0], sizes = [1, 128], strides = [1, 1]} : vector<1x384xf32> to vector<1x128xf32>
    %49 = arith.addf %47, %48 : vector<1x128xf32>
    %50 = arith.negf %49 : vector<1x128xf32>
    %51 = math.exp %50 : vector<1x128xf32>
    %cst_23 = arith.constant 1.000000e+00 : f32
    %52 = vector.broadcast %cst_23 : f32 to vector<1x128xf32>
    %53 = arith.addf %52, %51 : vector<1x128xf32>
    %54 = arith.divf %52, %53 : vector<1x128xf32>
    %55 = vector.extract_strided_slice %44 {offsets = [0, 128], sizes = [1, 128], strides = [1, 1]} : vector<1x384xf32> to vector<1x128xf32>
    %56 = vector.extract_strided_slice %46 {offsets = [0, 128], sizes = [1, 128], strides = [1, 1]} : vector<1x384xf32> to vector<1x128xf32>
    %57 = arith.addf %55, %56 : vector<1x128xf32>
    %58 = arith.negf %57 : vector<1x128xf32>
    %59 = math.exp %58 : vector<1x128xf32>
    %cst_24 = arith.constant 1.000000e+00 : f32
    %60 = vector.broadcast %cst_24 : f32 to vector<1x128xf32>
    %61 = arith.addf %60, %59 : vector<1x128xf32>
    %62 = arith.divf %60, %61 : vector<1x128xf32>
    %63 = vector.extract_strided_slice %44 {offsets = [0, 256], sizes = [1, 128], strides = [1, 1]} : vector<1x384xf32> to vector<1x128xf32>
    %64 = vector.extract_strided_slice %46 {offsets = [0, 256], sizes = [1, 128], strides = [1, 1]} : vector<1x384xf32> to vector<1x128xf32>
    %c0_25 = arith.constant 0 : index
    %c0_26 = arith.constant 0 : index
    %65 = vector.load %arg11[%c0_25, %c0_26] : memref<1x128xf32, #tpu.memory_space<vmem>>, vector<1x128xf32>
    %66 = arith.addf %64, %65 : vector<1x128xf32>
    %67 = arith.mulf %54, %66 : vector<1x128xf32>
    %68 = arith.addf %63, %67 : vector<1x128xf32>
    %69 = math.tanh %68 : vector<1x128xf32>
    %70 = arith.subf %40, %69 : vector<1x128xf32>
    %71 = arith.mulf %62, %70 : vector<1x128xf32>
    %72 = arith.addf %69, %71 : vector<1x128xf32>
    %c0_27 = arith.constant 0 : index
    %c0_28 = arith.constant 0 : index
    %73 = vector.load %arg15[%c0_27, %c0_28] : memref<2x128xf32, #tpu.memory_space<vmem>>, vector<1x128xf32>
    tpu.vector_store %arg15[%c0_27, %c0_28], %39 {strides = array<i32>} : memref<2x128xf32, #tpu.memory_space<vmem>>, vector<1x128xf32>,
    %c1_29 = arith.constant 1 : index
    %c0_30 = arith.constant 0 : index
    %74 = vector.load %arg15[%c1_29, %c0_30] : memref<2x128xf32, #tpu.memory_space<vmem>>, vector<1x128xf32>
    tpu.vector_store %arg15[%c1_29, %c0_30], %72 {strides = array<i32>} : memref<2x128xf32, #tpu.memory_space<vmem>>, vector<1x128xf32>,
    %c0_31 = arith.constant 0 : index
    %c0_32 = arith.constant 0 : index
    %75 = vector.load %arg12[%c0_31, %c0_32] : memref<128x128xf32, #tpu.memory_space<vmem>>, vector<128x128xf32>
    %cst_33 = arith.constant dense<0.000000e+00> : vector<1x128xf32>
    %76 = tpu.matmul %72, %75, %cst_33 {dimension_numbers = #tpu.dot_dimension_numbers<[1], [0], [0], [1], [0, 0, 1, 1], [], []>} : vector<1x128xf32>, vector<128x128xf32>, vector<1x128xf32> -> vector<1x128xf32>
    %c0_34 = arith.constant 0 : index
    %c0_35 = arith.constant 0 : index
    %77 = vector.load %arg13[%c0_34, %c0_35] : memref<1x128xf32, #tpu.memory_space<vmem>>, vector<1x128xf32>
    %78 = arith.addf %76, %77 : vector<1x128xf32>
    %79 = arith.index_cast %arg0 : i32 to index
    %c0_36 = arith.constant 0 : index
    %80 = vector.load %arg14[%79, %c0_36] : memref<8x128xf32, #tpu.memory_space<vmem>>, vector<1x128xf32>
    tpu.vector_store %arg14[%79, %c0_36], %78 {strides = array<i32>} : memref<8x128xf32, #tpu.memory_space<vmem>>, vector<1x128xf32>,
    return
  }
  func.func @transform_0(%arg0: i32, %arg1: memref<8xi32, #tpu.memory_space<smem>>) -> (i32, i32) {
    %c0_i32 = arith.constant 0 : i32
    %c0_i32_0 = arith.constant 0 : i32
    %c0_i32_1 = arith.constant 0 : i32
    return %c0_i32, %c0_i32_0 : i32, i32
  }
  func.func @transform_1(%arg0: i32, %arg1: memref<8xi32, #tpu.memory_space<smem>>) -> (i32, i32) {
    %c0_i32 = arith.constant 0 : i32
    %c0_i32_0 = arith.constant 0 : i32
    %c0_i32_1 = arith.constant 0 : i32
    return %c0_i32, %c0_i32_0 : i32, i32
  }
  func.func @transform_2(%arg0: i32, %arg1: memref<8xi32, #tpu.memory_space<smem>>) -> (i32, i32) {
    %c0_i32 = arith.constant 0 : i32
    %c0_i32_0 = arith.constant 0 : i32
    %c0_i32_1 = arith.constant 0 : i32
    return %c0_i32, %c0_i32_0 : i32, i32
  }
  func.func @transform_3(%arg0: i32, %arg1: memref<8xi32, #tpu.memory_space<smem>>) -> (i32, i32) {
    %c0_i32 = arith.constant 0 : i32
    %c0_i32_0 = arith.constant 0 : i32
    %c0_i32_1 = arith.constant 0 : i32
    return %c0_i32, %c0_i32_0 : i32, i32
  }
  func.func @transform_4(%arg0: i32, %arg1: memref<8xi32, #tpu.memory_space<smem>>) -> (i32, i32) {
    %c0_i32 = arith.constant 0 : i32
    %c0_i32_0 = arith.constant 0 : i32
    %c0_i32_1 = arith.constant 0 : i32
    return %c0_i32, %c0_i32_0 : i32, i32
  }
  func.func @transform_5(%arg0: i32, %arg1: memref<8xi32, #tpu.memory_space<smem>>) -> (i32, i32) {
    %c0_i32 = arith.constant 0 : i32
    %c0_i32_0 = arith.constant 0 : i32
    %c0_i32_1 = arith.constant 0 : i32
    return %c0_i32, %c0_i32_0 : i32, i32
  }
  func.func @transform_6(%arg0: i32, %arg1: memref<8xi32, #tpu.memory_space<smem>>) -> (i32, i32) {
    %c0_i32 = arith.constant 0 : i32
    %c0_i32_0 = arith.constant 0 : i32
    %c0_i32_1 = arith.constant 0 : i32
    return %c0_i32, %c0_i32_0 : i32, i32
  }
  func.func @transform_7(%arg0: i32, %arg1: memref<8xi32, #tpu.memory_space<smem>>) -> (i32, i32) {
    %c0_i32 = arith.constant 0 : i32
    %c0_i32_0 = arith.constant 0 : i32
    %c0_i32_1 = arith.constant 0 : i32
    return %c0_i32, %c0_i32_0 : i32, i32
  }
  func.func @transform_8(%arg0: i32, %arg1: memref<8xi32, #tpu.memory_space<smem>>) -> (i32, i32) {
    %c0_i32 = arith.constant 0 : i32
    %c0_i32_0 = arith.constant 0 : i32
    %c0_i32_1 = arith.constant 0 : i32
    return %c0_i32, %c0_i32_0 : i32, i32
  }
  func.func @transform_9(%arg0: i32, %arg1: memref<8xi32, #tpu.memory_space<smem>>) -> (i32, i32) {
    %c0_i32 = arith.constant 0 : i32
    %c0_i32_0 = arith.constant 0 : i32
    %c0_i32_1 = arith.constant 0 : i32
    return %c0_i32, %c0_i32_0 : i32, i32
  }
  func.func @transform_10(%arg0: i32, %arg1: memref<8xi32, #tpu.memory_space<smem>>) -> (i32, i32) {
    %c0_i32 = arith.constant 0 : i32
    %c0_i32_0 = arith.constant 0 : i32
    %c0_i32_1 = arith.constant 0 : i32
    return %c0_i32, %c0_i32_0 : i32, i32
  }
  func.func @transform_11(%arg0: i32, %arg1: memref<8xi32, #tpu.memory_space<smem>>) -> (i32, i32) {
    %c0_i32 = arith.constant 0 : i32
    %c0_i32_0 = arith.constant 0 : i32
    %c0_i32_1 = arith.constant 0 : i32
    return %c0_i32, %c0_i32_0 : i32, i32
  }
  func.func @transform_12(%arg0: i32, %arg1: memref<8xi32, #tpu.memory_space<smem>>) -> (i32, i32) {
    %c0_i32 = arith.constant 0 : i32
    %c0_i32_0 = arith.constant 0 : i32
    %c0_i32_1 = arith.constant 0 : i32
    return %c0_i32, %c0_i32_0 : i32, i32
  }
  func.func @transform_13(%arg0: i32, %arg1: memref<8xi32, #tpu.memory_space<smem>>) -> (i32, i32) {
    %c0_i32 = arith.constant 0 : i32
    %c0_i32_0 = arith.constant 0 : i32
    %c0_i32_1 = arith.constant 0 : i32
    return %c0_i32, %c0_i32_0 : i32, i32
  }
}

</mosaic_0001>

<llo_original>
// kernel: gru_rnn_decode.1
$region0: #{gru_rnn_decode.1}
  #allocation0 [shape = 'u32[]', space=smem, size = 0x4, offset = 0x4, fixed_abs, tag = 'smem constant byte address 0x4 - core index']
  #allocation1 [shape = 'u32[144,128]{1,0:T(1,128)}', space=vmem, size = 0x12000, scoped, tag = 'internal scratch']
  #allocation2 [shape = 's32[1]{0}', space=sflag, size = 0x4, scoped, tag = 'scoped memory for gru_rnn_decode.1']
  #allocation3 [shape = 'u8[512]{0}', space=smem, size = 0x200, scoped, tag = 'prefetched SMEM operand 0']
  %s0 = inlined_call_operand.vmem [shape: s32[8], index: 0, kind: input, shape index: {}]
  %s1 = inlined_call_operand.hbm [shape: f32[50,16], index: 1, kind: input, shape index: {}]
  %s2 = inlined_call_operand.vmem [shape: f32[2,128], index: 2, kind: input, shape index: {}]
  %s3 = inlined_call_operand.hbm [shape: f32[16,384], index: 3, kind: input, shape index: {}]
  %s4 = inlined_call_operand.hbm [shape: f32[128,384], index: 4, kind: input, shape index: {}]
  %s5 = inlined_call_operand.vmem [shape: f32[1,384], index: 5, kind: input, shape index: {}]
  %s6 = inlined_call_operand.vmem [shape: f32[1,128], index: 6, kind: input, shape index: {}]
  %s7 = inlined_call_operand.hbm [shape: f32[128,384], index: 7, kind: input, shape index: {}]
  %s8 = inlined_call_operand.hbm [shape: f32[128,384], index: 8, kind: input, shape index: {}]
  %s9 = inlined_call_operand.vmem [shape: f32[1,384], index: 9, kind: input, shape index: {}]
  %s10 = inlined_call_operand.vmem [shape: f32[1,128], index: 10, kind: input, shape index: {}]
  %s11 = inlined_call_operand.hbm [shape: f32[128,128], index: 11, kind: input, shape index: {}]
  %s12 = inlined_call_operand.vmem [shape: f32[1,128], index: 12, kind: input, shape index: {}]
  %s13 = inlined_call_operand.hbm [shape: f32[8,128], index: 13, kind: output, shape index: {0}]
  %s14 = inlined_call_operand.vmem [shape: f32[2,128], index: 14, kind: output, shape index: {1}]
  %15 = xla_tuple %s13, %s14
  %s16 = sld [smem:[#allocation0]]
  $region117: #{gru_rnn_decode.1} parent=0
    _
  %s18 = ssub.s32 1, %s16
  %s19 = scalar_select 0, %s18, %s16
  %s20 = sshll.u32 %s0, 4
  %s21 = int_to_ptr.vmem [resolvable:$true] %s20
  %23 = dma.vmem_to_smem %s21, 16, [#allocation3], [#allocation2]
  %24 = dma.done [#allocation2], 16
  %25 = sfence
  $region1: #{gru_rnn_decode.1} parent=0
    #allocation4 [shape = 'u8[28672]{0}', space=vmem, size = 0x7000, scoped, tag = 'input window, operand 1, single buffered']
    #allocation5 [shape = 's32[2]{0}', space=sflag, size = 0x8, scoped, tag = 'scoped memory for gru_rnn_decode.1']
    #allocation6 [shape = 's32[2]{0}', space=sflag, size = 0x8, scoped, tag = 'scoped memory for gru_rnn_decode.1']
    #allocation7 [shape = 'u8[24576]{0}', space=vmem, size = 0x6000, scoped, tag = 'input window, operand 3, single buffered']
    #allocation8 [shape = 's32[1]{0}', space=sflag, size = 0x4, scoped, tag = 'scoped memory for gru_rnn_decode.1']
    #allocation9 [shape = 'u8[196608]{0}', space=vmem, size = 0x30000, scoped, tag = 'input window, operand 4, single buffered']
    #allocation10 [shape = 'u8[196608]{0}', space=vmem, size = 0x30000, scoped, tag = 'input window, operand 7, single buffered']
    #allocation11 [shape = 's32[1]{0}', space=sflag, size = 0x4, scoped, tag = 'scoped memory for gru_rnn_decode.1']
    #allocation12 [shape = 'u8[196608]{0}', space=vmem, size = 0x30000, scoped, tag = 'input window, operand 8, single buffered']
    #allocation13 [shape = 'u8[65536]{0}', space=vmem, size = 0x10000, scoped, tag = 'input window, operand 11, single buffered']
    #allocation14 [shape = 's32[1]{0}', space=sflag, size = 0x4, scoped, tag = 'scoped memory for gru_rnn_decode.1']
    #allocation15 [shape = 'u8[4096]{0}', space=vmem, size = 0x1000, scoped, tag = 'output window, operand 0, single buffered']
    %26 = vsyncpa [#allocation5], 0
    %27 = vsyncpa [#allocation8], 0
    %28 = vsyncpa [#allocation11], 0
    %29 = vsyncpa [#allocation14], 0
    %30 = vsyncpa [#allocation6], 0
    loop: start=0, step=1, limit=10
    $region2: #{gru_rnn_decode.1} parent=1 // loop_pre_header
      _
    $region3: #{gru_rnn_decode.1} parent=1 // loop_header
      %s32 = sphi 0, %s36
      %p33 = scmp.ge.s32.totalorder %s32, 10
      %s40 = sphi 0, %s40
      %s42 = sphi 0, %s40
      %s43 = sphi 0, %s42
      %s57 = sphi 0, %s43
      %s61 = sphi 0, %s61
      %s63 = sphi 0, %s61
      %s64 = sphi 0, %s63
      %s78 = sphi 0, %s64
      %s82 = sphi 0, %s82
      %s84 = sphi 0, %s82
      %s85 = sphi 0, %s84
      %s99 = sphi 0, %s85
      %s103 = sphi 0, %s103
      %s105 = sphi 0, %s103
      %s106 = sphi 0, %s105
      %s120 = sphi 0, %s106
      %s124 = sphi 0, %s124
      %s126 = sphi 0, %s124
      %s127 = sphi 0, %s126
      %s141 = sphi 0, %s127
      %s145 = sphi 0, %s145
      %s147 = sphi 0, %s145
      %s148 = sphi 0, %s147
      %s162 = sphi 0, %s148
      %s166 = sphi 0, %s166
      %s168 = sphi 0, %s166
      %s169 = sphi 0, %s168
      %s183 = sphi 0, %s169
      %s187 = sphi 0, %s187
      %s189 = sphi 0, %s187
      %s190 = sphi 0, %s189
      %s204 = sphi 0, %s190
      %s208 = sphi 0, %s208
      %s210 = sphi 0, %s208
      %s211 = sphi 0, %s210
      %s225 = sphi 0, %s211
      %s229 = sphi 0, %s229
      %s231 = sphi 0, %s229
      %s232 = sphi 0, %s231
      %s246 = sphi 0, %s232
      %s250 = sphi 0, %s250
      %s252 = sphi 0, %s250
      %s253 = sphi 0, %s252
      %s267 = sphi 0, %s253
      %s271 = sphi 0, %s271
      %s273 = sphi 0, %s271
      %s274 = sphi 0, %s273
      %s288 = sphi 0, %s274
      %s292 = sphi 0, %s292
      %s294 = sphi 0, %s292
      %s295 = sphi 0, %s294
      %s309 = sphi 0, %s295
      %s313 = sphi 0, %s313
      %s315 = sphi 0, %s313
      %s316 = sphi 0, %s315
      %s330 = sphi 0, %s316
    $region4: #{gru_rnn_decode.1} parent=1 // loop_header_branch
      %35 = sbr.rel (%p33) target = $region8
    $region5: #{gru_rnn_decode.1} parent=1 // loop_body
      %s37 = ssub.s32 %s32, 1
      %s38 = ssub.s32 %s32, 2
      %s39 = sadd.s32 %s32, 1
      %s41 = sadd.s32 %s40, 1
      %p44 = scmp.eq.s32.totalorder %s32, 7
      %p45 = scmp.ne.s32.totalorder %s40, %s42
      %p46 = scmp.eq.s32.totalorder %s32, 0
      %p47 = por %p45, %p46
      %p48 = scmp.ne.s32.totalorder %s40, %s42
      %p49 = scmp.eq.s32.totalorder %s37, 7
      %p50 = por %p48, %p49
      %p51 = scmp.ne.s32.totalorder %s42, %s43
      %p52 = scmp.eq.s32.totalorder %s37, 0
      %p53 = por %p51, %p52
      %p54 = scmp.ne.s32.totalorder %s42, %s43
      %p55 = scmp.eq.s32.totalorder %s38, 7
      %p56 = por %p54, %p55
      %p58 = scmp.ne.s32.totalorder %s43, %s57
      %p59 = scmp.eq.s32.totalorder %s38, 0
      %p60 = por %p58, %p59
      %s62 = sadd.s32 %s61, 1
      %p65 = scmp.eq.s32.totalorder %s32, 7
      %p66 = scmp.ne.s32.totalorder %s61, %s63
      %p67 = scmp.eq.s32.totalorder %s32, 0
      %p68 = por %p66, %p67
      %p69 = scmp.ne.s32.totalorder %s61, %s63
      %p70 = scmp.eq.s32.totalorder %s37, 7
      %p71 = por %p69, %p70
      %p72 = scmp.ne.s32.totalorder %s63, %s64
      %p73 = scmp.eq.s32.totalorder %s37, 0
      %p74 = por %p72, %p73
      %p75 = scmp.ne.s32.totalorder %s63, %s64
      %p76 = scmp.eq.s32.totalorder %s38, 7
      %p77 = por %p75, %p76
      %p79 = scmp.ne.s32.totalorder %s64, %s78
      %p80 = scmp.eq.s32.totalorder %s38, 0
      %p81 = por %p79, %p80
      %s83 = sadd.s32 %s82, 1
      %p86 = scmp.eq.s32.totalorder %s32, 7
      %p87 = scmp.ne.s32.totalorder %s82, %s84
      %p88 = scmp.eq.s32.totalorder %s32, 0
      %p89 = por %p87, %p88
      %p90 = scmp.ne.s32.totalorder %s82, %s84
      %p91 = scmp.eq.s32.totalorder %s37, 7
      %p92 = por %p90, %p91
      %p93 = scmp.ne.s32.totalorder %s84, %s85
      %p94 = scmp.eq.s32.totalorder %s37, 0
      %p95 = por %p93, %p94
      %p96 = scmp.ne.s32.totalorder %s84, %s85
      %p97 = scmp.eq.s32.totalorder %s38, 7
      %p98 = por %p96, %p97
      %p100 = scmp.ne.s32.totalorder %s85, %s99
      %p101 = scmp.eq.s32.totalorder %s38, 0
      %p102 = por %p100, %p101
      %s104 = sadd.s32 %s103, 1
      %p107 = scmp.eq.s32.totalorder %s32, 7
      %p108 = scmp.ne.s32.totalorder %s103, %s105
      %p109 = scmp.eq.s32.totalorder %s32, 0
      %p110 = por %p108, %p109
      %p111 = scmp.ne.s32.totalorder %s103, %s105
      %p112 = scmp.eq.s32.totalorder %s37, 7
      %p113 = por %p111, %p112
      %p114 = scmp.ne.s32.totalorder %s105, %s106
      %p115 = scmp.eq.s32.totalorder %s37, 0
      %p116 = por %p114, %p115
      %p117 = scmp.ne.s32.totalorder %s105, %s106
      %p118 = scmp.eq.s32.totalorder %s38, 7
      %p119 = por %p117, %p118
      %p121 = scmp.ne.s32.totalorder %s106, %s120
      %p122 = scmp.eq.s32.totalorder %s38, 0
      %p123 = por %p121, %p122
      %s125 = sadd.s32 %s124, 1
      %p128 = scmp.eq.s32.totalorder %s32, 7
      %p129 = scmp.ne.s32.totalorder %s124, %s126
      %p130 = scmp.eq.s32.totalorder %s32, 0
      %p131 = por %p129, %p130
      %p132 = scmp.ne.s32.totalorder %s124, %s126
      %p133 = scmp.eq.s32.totalorder %s37, 7
      %p134 = por %p132, %p133
      %p135 = scmp.ne.s32.totalorder %s126, %s127
      %p136 = scmp.eq.s32.totalorder %s37, 0
      %p137 = por %p135, %p136
      %p138 = scmp.ne.s32.totalorder %s126, %s127
      %p139 = scmp.eq.s32.totalorder %s38, 7
      %p140 = por %p138, %p139
      %p142 = scmp.ne.s32.totalorder %s127, %s141
      %p143 = scmp.eq.s32.totalorder %s38, 0
      %p144 = por %p142, %p143
      %s146 = sadd.s32 %s145, 1
      %p149 = scmp.eq.s32.totalorder %s32, 7
      %p150 = scmp.ne.s32.totalorder %s145, %s147
      %p151 = scmp.eq.s32.totalorder %s32, 0
      %p152 = por %p150, %p151
      %p153 = scmp.ne.s32.totalorder %s145, %s147
      %p154 = scmp.eq.s32.totalorder %s37, 7
      %p155 = por %p153, %p154
      %p156 = scmp.ne.s32.totalorder %s147, %s148
      %p157 = scmp.eq.s32.totalorder %s37, 0
      %p158 = por %p156, %p157
      %p159 = scmp.ne.s32.totalorder %s147, %s148
      %p160 = scmp.eq.s32.totalorder %s38, 7
      %p161 = por %p159, %p160
      %p163 = scmp.ne.s32.totalorder %s148, %s162
      %p164 = scmp.eq.s32.totalorder %s38, 0
      %p165 = por %p163, %p164
      %s167 = sadd.s32 %s166, 1
      %p170 = scmp.eq.s32.totalorder %s32, 7
      %p171 = scmp.ne.s32.totalorder %s166, %s168
      %p172 = scmp.eq.s32.totalorder %s32, 0
      %p173 = por %p171, %p172
      %p174 = scmp.ne.s32.totalorder %s166, %s168
      %p175 = scmp.eq.s32.totalorder %s37, 7
      %p176 = por %p174, %p175
      %p177 = scmp.ne.s32.totalorder %s168, %s169
      %p178 = scmp.eq.s32.totalorder %s37, 0
      %p179 = por %p177, %p178
      %p180 = scmp.ne.s32.totalorder %s168, %s169
      %p181 = scmp.eq.s32.totalorder %s38, 7
      %p182 = por %p180, %p181
      %p184 = scmp.ne.s32.totalorder %s169, %s183
      %p185 = scmp.eq.s32.totalorder %s38, 0
      %p186 = por %p184, %p185
      %s188 = sadd.s32 %s187, 1
      %p191 = scmp.eq.s32.totalorder %s32, 7
      %p192 = scmp.ne.s32.totalorder %s187, %s189
      %p193 = scmp.eq.s32.totalorder %s32, 0
      %p194 = por %p192, %p193
      %p195 = scmp.ne.s32.totalorder %s187, %s189
      %p196 = scmp.eq.s32.totalorder %s37, 7
      %p197 = por %p195, %p196
      %p198 = scmp.ne.s32.totalorder %s189, %s190
      %p199 = scmp.eq.s32.totalorder %s37, 0
      %p200 = por %p198, %p199
      %p201 = scmp.ne.s32.totalorder %s189, %s190
      %p202 = scmp.eq.s32.totalorder %s38, 7
      %p203 = por %p201, %p202
      %p205 = scmp.ne.s32.totalorder %s190, %s204
      %p206 = scmp.eq.s32.totalorder %s38, 0
      %p207 = por %p205, %p206
      %s209 = sadd.s32 %s208, 1
      %p212 = scmp.eq.s32.totalorder %s32, 7
      %p213 = scmp.ne.s32.totalorder %s208, %s210
      %p214 = scmp.eq.s32.totalorder %s32, 0
      %p215 = por %p213, %p214
      %p216 = scmp.ne.s32.totalorder %s208, %s210
      %p217 = scmp.eq.s32.totalorder %s37, 7
      %p218 = por %p216, %p217
      %p219 = scmp.ne.s32.totalorder %s210, %s211
      %p220 = scmp.eq.s32.totalorder %s37, 0
      %p221 = por %p219, %p220
      %p222 = scmp.ne.s32.totalorder %s210, %s211
      %p223 = scmp.eq.s32.totalorder %s38, 7
      %p224 = por %p222, %p223
      %p226 = scmp.ne.s32.totalorder %s211, %s225
      %p227 = scmp.eq.s32.totalorder %s38, 0
      %p228 = por %p226, %p227
      %s230 = sadd.s32 %s229, 1
      %p233 = scmp.eq.s32.totalorder %s32, 7
      %p234 = scmp.ne.s32.totalorder %s229, %s231
      %p235 = scmp.eq.s32.totalorder %s32, 0
      %p236 = por %p234, %p235
      %p237 = scmp.ne.s32.totalorder %s229, %s231
      %p238 = scmp.eq.s32.totalorder %s37, 7
      %p239 = por %p237, %p238
      %p240 = scmp.ne.s32.totalorder %s231, %s232
      %p241 = scmp.eq.s32.totalorder %s37, 0
      %p242 = por %p240, %p241
      %p243 = scmp.ne.s32.totalorder %s231, %s232
      %p244 = scmp.eq.s32.totalorder %s38, 7
      %p245 = por %p243, %p244
      %p247 = scmp.ne.s32.totalorder %s232, %s246
      %p248 = scmp.eq.s32.totalorder %s38, 0
      %p249 = por %p247, %p248
      %s251 = sadd.s32 %s250, 1
      %p254 = scmp.eq.s32.totalorder %s32, 7
      %p255 = scmp.ne.s32.totalorder %s250, %s252
      %p256 = scmp.eq.s32.totalorder %s32, 0
      %p257 = por %p255, %p256
      %p258 = scmp.ne.s32.totalorder %s250, %s252
      %p259 = scmp.eq.s32.totalorder %s37, 7
      %p260 = por %p258, %p259
      %p261 = scmp.ne.s32.totalorder %s252, %s253
      %p262 = scmp.eq.s32.totalorder %s37, 0
      %p263 = por %p261, %p262
      %p264 = scmp.ne.s32.totalorder %s252, %s253
      %p265 = scmp.eq.s32.totalorder %s38, 7
      %p266 = por %p264, %p265
      %p268 = scmp.ne.s32.totalorder %s253, %s267
      %p269 = scmp.eq.s32.totalorder %s38, 0
      %p270 = por %p268, %p269
      %s272 = sadd.s32 %s271, 1
      %p275 = scmp.eq.s32.totalorder %s32, 7
      %p276 = scmp.ne.s32.totalorder %s271, %s273
      %p277 = scmp.eq.s32.totalorder %s32, 0
      %p278 = por %p276, %p277
      %p279 = scmp.ne.s32.totalorder %s271, %s273
      %p280 = scmp.eq.s32.totalorder %s37, 7
      %p281 = por %p279, %p280
      %p282 = scmp.ne.s32.totalorder %s273, %s274
      %p283 = scmp.eq.s32.totalorder %s37, 0
      %p284 = por %p282, %p283
      %p285 = scmp.ne.s32.totalorder %s273, %s274
      %p286 = scmp.eq.s32.totalorder %s38, 7
      %p287 = por %p285, %p286
      %p289 = scmp.ne.s32.totalorder %s274, %s288
      %p290 = scmp.eq.s32.totalorder %s38, 0
      %p291 = por %p289, %p290
      %s293 = sadd.s32 %s292, 1
      %p296 = scmp.eq.s32.totalorder %s32, 7
      %p297 = scmp.ne.s32.totalorder %s292, %s294
      %p298 = scmp.eq.s32.totalorder %s32, 0
      %p299 = por %p297, %p298
      %p300 = scmp.ne.s32.totalorder %s292, %s294
      %p301 = scmp.eq.s32.totalorder %s37, 7
      %p302 = por %p300, %p301
      %p303 = scmp.ne.s32.totalorder %s294, %s295
      %p304 = scmp.eq.s32.totalorder %s37, 0
      %p305 = por %p303, %p304
      %p306 = scmp.ne.s32.totalorder %s294, %s295
      %p307 = scmp.eq.s32.totalorder %s38, 7
      %p308 = por %p306, %p307
      %p310 = scmp.ne.s32.totalorder %s295, %s309
      %p311 = scmp.eq.s32.totalorder %s38, 0
      %p312 = por %p310, %p311
      %s314 = sadd.s32 %s313, 1
      %p317 = scmp.eq.s32.totalorder %s32, 7
      %p318 = scmp.ne.s32.totalorder %s313, %s315
      %p319 = scmp.eq.s32.totalorder %s32, 0
      %p320 = por %p318, %p319
      %p321 = scmp.ne.s32.totalorder %s313, %s315
      %p322 = scmp.eq.s32.totalorder %s37, 7
      %p323 = por %p321, %p322
      %p324 = scmp.ne.s32.totalorder %s315, %s316
      %p325 = scmp.eq.s32.totalorder %s37, 0
      %p326 = por %p324, %p325
      %p327 = scmp.ne.s32.totalorder %s315, %s316
      %p328 = scmp.eq.s32.totalorder %s38, 7
      %p329 = por %p327, %p328
      %p331 = scmp.ne.s32.totalorder %s316, %s330
      %p332 = scmp.eq.s32.totalorder %s38, 0
      %p333 = por %p331, %p332
      %p334 = scmp.le.s32.totalorder 1, %s32
      %p335 = scmp.lt.s32.totalorder %s32, 9
      %p336 = pnand %p334, %p335
      %p337 = pneg %p336
      // Predicated region
      $region9: #{gru_rnn_decode.1} parent=5 // pred_check
        _
      $region10: #{gru_rnn_decode.1} parent=5 // pred_check_branch
        %339 = sbr.rel (%p336) target = $region12
      $region11: #{gru_rnn_decode.1} parent=5 // pred_region
        %s340 = ssub.s32 %s32, 1
        // Predicated region
        $region13: #{gru_rnn_decode.1} parent=11 // pred_check
          %p341 = pneg %p53
        $region14: #{gru_rnn_decode.1} parent=11 // pred_check_branch
          %343 = sbr.rel (%p341) target = $region16
        $region15: #{gru_rnn_decode.1} parent=11 // pred_region
          %s345 = ssub.s32 896, 896
          %346 = vsyncadd [#allocation5], %s345
          %s347 = sshll.u32 [#allocation4], 4
          %s348 = int_to_ptr.vmem [resolvable:$true] %s347
          %353 = dma.hbm_to_vmem [thread:$0]  %s1, 896, %s348, [#allocation5], 128, 128, 8
        $region16: #{gru_rnn_decode.1} parent=11 // pred_fallthru
          _
        // Predicated region
        $region17: #{gru_rnn_decode.1} parent=11 // pred_check
          %p354 = pneg %p74
        $region18: #{gru_rnn_decode.1} parent=11 // pred_check_branch
          %356 = sbr.rel (%p354) target = $region20
        $region19: #{gru_rnn_decode.1} parent=11 // pred_region
          _
        $region20: #{gru_rnn_decode.1} parent=11 // pred_fallthru
          _
        // Predicated region
        $region21: #{gru_rnn_decode.1} parent=11 // pred_check
          %p357 = pneg %p95
        $region22: #{gru_rnn_decode.1} parent=11 // pred_check_branch
          %359 = sbr.rel (%p357) target = $region24
        $region23: #{gru_rnn_decode.1} parent=11 // pred_region
          %s361 = ssub.s32 768, 768
          %362 = vsyncadd [#allocation8], %s361
          %s363 = sshll.u32 [#allocation7], 4
          %s364 = int_to_ptr.vmem [resolvable:$true] %s363
          %369 = dma.hbm_to_vmem [thread:$0]  %s3, 768, %s364, [#allocation8], 384, 384, 24
        $region24: #{gru_rnn_decode.1} parent=11 // pred_fallthru
          _
        // Predicated region
        $region25: #{gru_rnn_decode.1} parent=11 // pred_check
          %p370 = pneg %p116
        $region26: #{gru_rnn_decode.1} parent=11 // pred_check_branch
          %372 = sbr.rel (%p370) target = $region28
        $region27: #{gru_rnn_decode.1} parent=11 // pred_region
          %s374 = ssub.s32 6144, 6144
          %375 = vsyncadd [#allocation8], %s374
          %s376 = sshll.u32 [#allocation9], 4
          %s377 = int_to_ptr.vmem [resolvable:$true] %s376
          %382 = dma.hbm_to_vmem [thread:$0]  %s4, 6144, %s377, [#allocation8], 384, 384, 24
        $region28: #{gru_rnn_decode.1} parent=11 // pred_fallthru
          _
        // Predicated region
        $region29: #{gru_rnn_decode.1} parent=11 // pred_check
          %p383 = pneg %p137
        $region30: #{gru_rnn_decode.1} parent=11 // pred_check_branch
          %385 = sbr.rel (%p383) target = $region32
        $region31: #{gru_rnn_decode.1} parent=11 // pred_region
          _
        $region32: #{gru_rnn_decode.1} parent=11 // pred_fallthru
          _
        // Predicated region
        $region33: #{gru_rnn_decode.1} parent=11 // pred_check
          %p386 = pneg %p158
        $region34: #{gru_rnn_decode.1} parent=11 // pred_check_branch
          %388 = sbr.rel (%p386) target = $region36
        $region35: #{gru_rnn_decode.1} parent=11 // pred_region
          _
        $region36: #{gru_rnn_decode.1} parent=11 // pred_fallthru
          _
        // Predicated region
        $region37: #{gru_rnn_decode.1} parent=11 // pred_check
          %p389 = pneg %p179
        $region38: #{gru_rnn_decode.1} parent=11 // pred_check_branch
          %391 = sbr.rel (%p389) target = $region40
        $region39: #{gru_rnn_decode.1} parent=11 // pred_region
          %s393 = ssub.s32 6144, 6144
          %394 = vsyncadd [#allocation11], %s393
          %s395 = sshll.u32 [#allocation10], 4
          %s396 = int_to_ptr.vmem [resolvable:$true] %s395
          %401 = dma.hbm_to_vmem [thread:$0]  %s7, 6144, %s396, [#allocation11], 384, 384, 24
        $region40: #{gru_rnn_decode.1} parent=11 // pred_fallthru
          _
        // Predicated region
        $region41: #{gru_rnn_decode.1} parent=11 // pred_check
          %p402 = pneg %p200
        $region42: #{gru_rnn_decode.1} parent=11 // pred_check_branch
          %404 = sbr.rel (%p402) target = $region44
        $region43: #{gru_rnn_decode.1} parent=11 // pred_region
          %s406 = ssub.s32 6144, 6144
          %407 = vsyncadd [#allocation11], %s406
          %s408 = sshll.u32 [#allocation12], 4
          %s409 = int_to_ptr.vmem [resolvable:$true] %s408
          %414 = dma.hbm_to_vmem [thread:$0]  %s8, 6144, %s409, [#allocation11], 384, 384, 24
        $region44: #{gru_rnn_decode.1} parent=11 // pred_fallthru
          _
        // Predicated region
        $region45: #{gru_rnn_decode.1} parent=11 // pred_check
          %p415 = pneg %p221
        $region46: #{gru_rnn_decode.1} parent=11 // pred_check_branch
          %417 = sbr.rel (%p415) target = $region48
        $region47: #{gru_rnn_decode.1} parent=11 // pred_region
          _
        $region48: #{gru_rnn_decode.1} parent=11 // pred_fallthru
          _
        // Predicated region
        $region49: #{gru_rnn_decode.1} parent=11 // pred_check
          %p418 = pneg %p242
        $region50: #{gru_rnn_decode.1} parent=11 // pred_check_branch
          %420 = sbr.rel (%p418) target = $region52
        $region51: #{gru_rnn_decode.1} parent=11 // pred_region
          _
        $region52: #{gru_rnn_decode.1} parent=11 // pred_fallthru
          _
        // Predicated region
        $region53: #{gru_rnn_decode.1} parent=11 // pred_check
          %p421 = pneg %p263
        $region54: #{gru_rnn_decode.1} parent=11 // pred_check_branch
          %423 = sbr.rel (%p421) target = $region56
        $region55: #{gru_rnn_decode.1} parent=11 // pred_region
          %s425 = ssub.s32 2048, 2048
          %426 = vsyncadd [#allocation14], %s425
          %s427 = sshll.u32 [#allocation13], 4
          %s428 = int_to_ptr.vmem [resolvable:$true] %s427
          %433 = dma.hbm_to_vmem [thread:$0]  %s11, 2048, %s428, [#allocation14], 128, 128, 8
        $region56: #{gru_rnn_decode.1} parent=11 // pred_fallthru
          _
        // Predicated region
        $region57: #{gru_rnn_decode.1} parent=11 // pred_check
          %p434 = pneg %p284
        $region58: #{gru_rnn_decode.1} parent=11 // pred_check_branch
          %436 = sbr.rel (%p434) target = $region60
        $region59: #{gru_rnn_decode.1} parent=11 // pred_region
          _
        $region60: #{gru_rnn_decode.1} parent=11 // pred_fallthru
          _
      $region12: #{gru_rnn_decode.1} parent=5 // pred_fallthru
        _
      %p437 = scmp.lt.s32.totalorder %s32, 8
      // Predicated region
      $region61: #{gru_rnn_decode.1} parent=5 // pred_check
        %p438 = pneg %p437
      $region62: #{gru_rnn_decode.1} parent=5 // pred_check_branch
        %440 = sbr.rel (%p438) target = $region64
      $region63: #{gru_rnn_decode.1} parent=5 // pred_region
        _
      $region64: #{gru_rnn_decode.1} parent=5 // pred_fallthru
        _
      %p441 = scmp.le.s32.totalorder 1, %s32
      %p442 = scmp.lt.s32.totalorder %s32, 9
      %p443 = pnand %p441, %p442
      %p444 = pneg %p443
      // Predicated region
      $region65: #{gru_rnn_decode.1} parent=5 // pred_check
        _
      $region66: #{gru_rnn_decode.1} parent=5 // pred_check_branch
        %446 = sbr.rel (%p443) target = $region68
      $region67: #{gru_rnn_decode.1} parent=5 // pred_region
        %s447 = ssub.s32 %s32, 1
        // Predicated region
        $region69: #{gru_rnn_decode.1} parent=67 // pred_check
          %p448 = pneg %p53
        $region70: #{gru_rnn_decode.1} parent=67 // pred_check_branch
          %450 = sbr.rel (%p448) target = $region72
        $region71: #{gru_rnn_decode.1} parent=67 // pred_region
          %451 = dma.done [#allocation5], 896
        $region72: #{gru_rnn_decode.1} parent=67 // pred_fallthru
          _
        // Predicated region
        $region73: #{gru_rnn_decode.1} parent=67 // pred_check
          %p452 = pneg %p95
        $region74: #{gru_rnn_decode.1} parent=67 // pred_check_branch
          %454 = sbr.rel (%p452) target = $region76
        $region75: #{gru_rnn_decode.1} parent=67 // pred_region
          %455 = dma.done [#allocation8], 768
        $region76: #{gru_rnn_decode.1} parent=67 // pred_fallthru
          _
        // Predicated region
        $region77: #{gru_rnn_decode.1} parent=67 // pred_check
          %p456 = pneg %p116
        $region78: #{gru_rnn_decode.1} parent=67 // pred_check_branch
          %458 = sbr.rel (%p456) target = $region80
        $region79: #{gru_rnn_decode.1} parent=67 // pred_region
          %459 = dma.done [#allocation8], 6144
        $region80: #{gru_rnn_decode.1} parent=67 // pred_fallthru
          _
        // Predicated region
        $region81: #{gru_rnn_decode.1} parent=67 // pred_check
          %p460 = pneg %p179
        $region82: #{gru_rnn_decode.1} parent=67 // pred_check_branch
          %462 = sbr.rel (%p460) target = $region84
        $region83: #{gru_rnn_decode.1} parent=67 // pred_region
          %463 = dma.done [#allocation11], 6144
        $region84: #{gru_rnn_decode.1} parent=67 // pred_fallthru
          _
        // Predicated region
        $region85: #{gru_rnn_decode.1} parent=67 // pred_check
          %p464 = pneg %p200
        $region86: #{gru_rnn_decode.1} parent=67 // pred_check_branch
          %466 = sbr.rel (%p464) target = $region88
        $region87: #{gru_rnn_decode.1} parent=67 // pred_region
          %467 = dma.done [#allocation11], 6144
        $region88: #{gru_rnn_decode.1} parent=67 // pred_fallthru
          _
        // Predicated region
        $region89: #{gru_rnn_decode.1} parent=67 // pred_check
          %p468 = pneg %p263
        $region90: #{gru_rnn_decode.1} parent=67 // pred_check_branch
          %470 = sbr.rel (%p468) target = $region92
        $region91: #{gru_rnn_decode.1} parent=67 // pred_region
          %471 = dma.done [#allocation14], 2048
        $region92: #{gru_rnn_decode.1} parent=67 // pred_fallthru
          _
        %p472 = pneg %p53
        %p473 = pneg %p50
        %p474 = pneg %p74
        %p475 = pneg %p71
        %p476 = pneg %p95
        %p477 = pneg %p92
        %p478 = pneg %p116
        %p479 = pneg %p113
        %p480 = pneg %p137
        %p481 = pneg %p134
        %p482 = pneg %p158
        %p483 = pneg %p155
        %p484 = pneg %p179
        %p485 = pneg %p176
        %p486 = pneg %p200
        %p487 = pneg %p197
        %p488 = pneg %p221
        %p489 = pneg %p218
        %p490 = pneg %p242
        %p491 = pneg %p239
        %p492 = pneg %p263
        %p493 = pneg %p260
        %p494 = pneg %p284
        %p495 = pneg %p281
        %p496 = pneg %p305
        %p497 = pneg %p302
        %p498 = pneg %p326
        %p499 = pneg %p323
        %p500 = scmp.eq.s32.totalorder %s37, 0
        // Predicated region
        $region93: #{gru_rnn_decode.1} parent=67 // pred_check
          %p501 = pneg %p500
        $region94: #{gru_rnn_decode.1} parent=67 // pred_check_branch
          %503 = sbr.rel (%p501) target = $region96
        $region95: #{gru_rnn_decode.1} parent=67 // pred_region
          %v504 = vld [vmem:[%s2] sm:$0x3]
          %505 = vst [vmem:[%s14] sm:$0x3] %v504
        $region96: #{gru_rnn_decode.1} parent=67 // pred_fallthru
          _
        %s506 = sld [smem:[#allocation3 + %s37]]
        %s507 = scalar_lea.vmem [#allocation4], %s506
        %v508 = vld [vmem:[%s507] sm:$0x1]
        %v509 = vld [vmem:[%s14] sm:$0x1]
        %v510 = vld [vmem:[#allocation7] sm:$0xff]
        %v511 = vld [vmem:[#allocation7 + $0x8] sm:$0xff]
        %v512 = vld [vmem:[#allocation7 + $0x10] sm:$0xff]
        %v513 = vld [vmem:[#allocation7 + $0x18] sm:$0xff]
        %v514 = vld [vmem:[#allocation7 + $0x20] sm:$0xff]
        %v515 = vld [vmem:[#allocation7 + $0x28] sm:$0xff]
        %v516 = vld [vmem:[%s5] sm:$0x7]
        %v518 = vlaneseq
        %v519 = vshrl.u32 %v518, 7
        %v520 = vsub.s32 0, %v519
        %v521 = vrot.slane %v516, %v520
        %v522 = vlaneseq
        %v523 = vshrl.u32 %v522, 7
        %v524 = vsub.s32 1, %v523
        %v525 = vrot.slane %v516, %v524
        %v526 = vlaneseq
        %v527 = vshrl.u32 %v526, 7
        %v528 = vsub.s32 2, %v527
        %v529 = vrot.slane %v516, %v528
        %vm533 = vcmask 130048
        %v535 = vsel %vm533, %v508, 0
        %537 = vmatprep.subr.mxu0 %v511
        %538 = vmatpush1.msra.mxu0 %v510
        %539 = vmatprep.subr.mxu0 %v514
        %540 = vmatpush1.msra.mxu0 %v513
        %541 = vmatprep.subr.mxu0 0.0
        %542 = vmatpush1.msra.mxu0 0.0
        %543 = vmatprep.subr.mxu0 0.0
        %544 = vmatpush1.msra.mxu0 0.0
        %545 = vmatprep.subr.mxu0 0.0
        %546 = vmatpush1.msra.mxu0 0.0
        %547 = vmatprep.subr.mxu0 0.0
        %548 = vmatpush1.msra.mxu0 0.0
        %549 = vmatprep.subr.mxu0 0.0
        %550 = vmatpush1.msra.mxu0 0.0
        %551 = vmatprep.subr.mxu0 0.0
        %552 = vmatpush1.msra.mxu0 0.0
        %553 = vmatprep.subr.mxu0 0.0
        %554 = vmatpush1.msra.mxu0 0.0
        %555 = vmatprep.subr.mxu0 0.0
        %556 = vmatpush1.msra.mxu0 0.0
        %557 = vmatprep.subr.mxu0 0.0
        %558 = vmatpush1.msra.mxu0 0.0
        %559 = vmatprep.subr.mxu0 0.0
        %560 = vmatpush1.msra.mxu0 0.0
        %561 = vmatprep.subr.mxu0 0.0
        %562 = vmatpush1.msra.mxu0 0.0
        %563 = vmatprep.subr.mxu0 0.0
        %564 = vmatpush1.msra.mxu0 0.0
        %565 = vmatprep.subr.mxu0 0.0
        %566 = vmatpush1.msra.mxu0 0.0
        %567 = vmatprep.subr.mxu0 0.0
        %568 = vmatpush1.msra.mxu0 0.0
        %569 = vmatprep.subr.mxu0 0.0
        %570 = vmatpush1.msra.mxu0 0.0
        %571 = vmatprep.subr.mxu0 0.0
        %572 = vmatpush1.msra.mxu0 0.0
        %573 = vmatprep.subr.mxu0 0.0
        %574 = vmatpush1.msra.mxu0 0.0
        %575 = vmatprep.subr.mxu0 0.0
        %576 = vmatpush1.msra.mxu0 0.0
        %577 = vmatprep.subr.mxu0 0.0
        %578 = vmatpush1.msra.mxu0 0.0
        %579 = vmatprep.subr.mxu0 0.0
        %580 = vmatpush1.msra.mxu0 0.0
        %581 = vmatprep.subr.mxu0 0.0
        %582 = vmatpush1.msra.mxu0 0.0
        %583 = vmatprep.subr.mxu0 0.0
        %584 = vmatpush1.msra.mxu0 0.0
        %585 = vmatprep.subr.mxu0 0.0
        %586 = vmatpush1.msra.mxu0 0.0
        %587 = vmatprep.subr.mxu0 0.0
        %588 = vmatpush1.msra.mxu0 0.0
        %589 = vmatprep.subr.mxu0 0.0
        %590 = vmatpush1.msra.mxu0 0.0
        %591 = vmatprep.subr.mxu0 0.0
        %592 = vmatpush1.msra.mxu0 0.0
        %593 = vmatprep.subr.mxu0 0.0
        %594 = vmatpush1.msra.mxu0 0.0
        %595 = vmatprep.subr.mxu0 0.0
        %596 = vmatpush1.msra.mxu0 0.0
        %597 = vmatprep.subr.mxu0 0.0
        %598 = vmatpush1.msra.mxu0 0.0
        %599 = vmatprep.subr.mxu0 0.0
        %600 = vmatpush1.msra.mxu0 0.0
        %601 = vmatprep.mubr.f32.mxu0 0.0
        %602 = vmatmul.mubr.f32.gmra.mrb[0].mxu0 %v535
        %v603 = vpop.f32.mrb[0].mxu0
        %v604 = vadd.f32 %v521, %v603
        %v605 = vpop.f32.mrb[0].mxu0
        %v606 = vadd.f32 %v525, %v605
        %607 = vdwg.mxu0
        %608 = vmatprep.subr.mxu0 0.0
        %609 = vmatpush1.msra.mxu0 %v512
        %610 = vmatprep.subr.mxu0 0.0
        %611 = vmatpush1.msra.mxu0 %v515
        %612 = vmatprep.subr.mxu0 0.0
        %613 = vmatpush1.msra.mxu0 0.0
        %614 = vmatprep.subr.mxu0 0.0
        %615 = vmatpush1.msra.mxu0 0.0
        %616 = vmatprep.subr.mxu0 0.0
        %617 = vmatpush1.msra.mxu0 0.0
        %618 = vmatprep.subr.mxu0 0.0
        %619 = vmatpush1.msra.mxu0 0.0
        %620 = vmatprep.subr.mxu0 0.0
        %621 = vmatpush1.msra.mxu0 0.0
        %622 = vmatprep.subr.mxu0 0.0
        %623 = vmatpush1.msra.mxu0 0.0
        %624 = vmatprep.subr.mxu0 0.0
        %625 = vmatpush1.msra.mxu0 0.0
        %626 = vmatprep.subr.mxu0 0.0
        %627 = vmatpush1.msra.mxu0 0.0
        %628 = vmatprep.subr.mxu0 0.0
        %629 = vmatpush1.msra.mxu0 0.0
        %630 = vmatprep.subr.mxu0 0.0
        %631 = vmatpush1.msra.mxu0 0.0
        %632 = vmatprep.subr.mxu0 0.0
        %633 = vmatpush1.msra.mxu0 0.0
        %634 = vmatprep.subr.mxu0 0.0
        %635 = vmatpush1.msra.mxu0 0.0
        %636 = vmatprep.subr.mxu0 0.0
        %637 = vmatpush1.msra.mxu0 0.0
        %638 = vmatprep.subr.mxu0 0.0
        %639 = vmatpush1.msra.mxu0 0.0
        %640 = vmatprep.subr.mxu0 0.0
        %641 = vmatpush1.msra.mxu0 0.0
        %642 = vmatprep.subr.mxu0 0.0
        %643 = vmatpush1.msra.mxu0 0.0
        %644 = vmatprep.subr.mxu0 0.0
        %645 = vmatpush1.msra.mxu0 0.0
        %646 = vmatprep.subr.mxu0 0.0
        %647 = vmatpush1.msra.mxu0 0.0
        %648 = vmatprep.subr.mxu0 0.0
        %649 = vmatpush1.msra.mxu0 0.0
        %650 = vmatprep.subr.mxu0 0.0
        %651 = vmatpush1.msra.mxu0 0.0
        %652 = vmatprep.subr.mxu0 0.0
        %653 = vmatpush1.msra.mxu0 0.0
        %654 = vmatprep.subr.mxu0 0.0
        %655 = vmatpush1.msra.mxu0 0.0
        %656 = vmatprep.subr.mxu0 0.0
        %657 = vmatpush1.msra.mxu0 0.0
        %658 = vmatprep.subr.mxu0 0.0
        %659 = vmatpush1.msra.mxu0 0.0
        %660 = vmatprep.subr.mxu0 0.0
        %661 = vmatpush1.msra.mxu0 0.0
        %662 = vmatprep.subr.mxu0 0.0
        %663 = vmatpush1.msra.mxu0 0.0
        %664 = vmatprep.subr.mxu0 0.0
        %665 = vmatpush1.msra.mxu0 0.0
        %666 = vmatprep.subr.mxu0 0.0
        %667 = vmatpush1.msra.mxu0 0.0
        %668 = vmatprep.subr.mxu0 0.0
        %669 = vmatpush1.msra.mxu0 0.0
        %670 = vmatprep.subr.mxu0 0.0
        %671 = vmatpush1.msra.mxu0 0.0
        %672 = vmatprep.mubr.f32.mxu0 0.0
        %673 = vmatmul.mubr.f32.gmra.mrb[0].mxu0 %v535
        %v674 = vpop.f32.mrb[0].mxu0
        %v675 = vadd.f32 %v529, %v674
        %v676 = vpop.f32.mrb[0].mxu0
        %677 = vdwg.mxu0
        %v678 = vld [vmem:[#allocation9] sm:$0xff]
        %v679 = vld [vmem:[#allocation9 + $0x8] sm:$0xff]
        %v680 = vld [vmem:[#allocation9 + $0x10] sm:$0xff]
        %v681 = vld [vmem:[#allocation9 + $0x18] sm:$0xff]
        %v682 = vld [vmem:[#allocation9 + $0x20] sm:$0xff]
        %v683 = vld [vmem:[#allocation9 + $0x28] sm:$0xff]
        %v684 = vld [vmem:[#allocation9 + $0x30] sm:$0xff]
        %v685 = vld [vmem:[#allocation9 + $0x38] sm:$0xff]
        %v686 = vld [vmem:[#allocation9 + $0x40] sm:$0xff]
        %v687 = vld [vmem:[#allocation9 + $0x48] sm:$0xff]
        %v688 = vld [vmem:[#allocation9 + $0x50] sm:$0xff]
        %v689 = vld [vmem:[#allocation9 + $0x58] sm:$0xff]
        %v690 = vld [vmem:[#allocation9 + $0x60] sm:$0xff]
        %v691 = vld [vmem:[#allocation9 + $0x68] sm:$0xff]
        %v692 = vld [vmem:[#allocation9 + $0x70] sm:$0xff]
        %v693 = vld [vmem:[#allocation9 + $0x78] sm:$0xff]
        %v694 = vld [vmem:[#allocation9 + $0x80] sm:$0xff]
        %v695 = vld [vmem:[#allocation9 + $0x88] sm:$0xff]
        %v696 = vld [vmem:[#allocation9 + $0x90] sm:$0xff]
        %v697 = vld [vmem:[#allocation9 + $0x98] sm:$0xff]
        %v698 = vld [vmem:[#allocation9 + $0xa0] sm:$0xff]
        %v699 = vld [vmem:[#allocation9 + $0xa8] sm:$0xff]
        %v700 = vld [vmem:[#allocation9 + $0xb0] sm:$0xff]
        %v701 = vld [vmem:[#allocation9 + $0xb8] sm:$0xff]
        %v702 = vld [vmem:[#allocation9 + $0xc0] sm:$0xff]
        %v703 = vld [vmem:[#allocation9 + $0xc8] sm:$0xff]
        %v704 = vld [vmem:[#allocation9 + $0xd0] sm:$0xff]
        %v705 = vld [vmem:[#allocation9 + $0xd8] sm:$0xff]
        %v706 = vld [vmem:[#allocation9 + $0xe0] sm:$0xff]
        %v707 = vld [vmem:[#allocation9 + $0xe8] sm:$0xff]
        %v708 = vld [vmem:[#allocation9 + $0xf0] sm:$0xff]
        %v709 = vld [vmem:[#allocation9 + $0xf8] sm:$0xff]
        %v710 = vld [vmem:[#allocation9 + $0x100] sm:$0xff]
        %v711 = vld [vmem:[#allocation9 + $0x108] sm:$0xff]
        %v712 = vld [vmem:[#allocation9 + $0x110] sm:$0xff]
        %v713 = vld [vmem:[#allocation9 + $0x118] sm:$0xff]
        %v714 = vld [vmem:[#allocation9 + $0x120] sm:$0xff]
        %v715 = vld [vmem:[#allocation9 + $0x128] sm:$0xff]
        %v716 = vld [vmem:[#allocation9 + $0x130] sm:$0xff]
        %v717 = vld [vmem:[#allocation9 + $0x138] sm:$0xff]
        %v718 = vld [vmem:[#allocation9 + $0x140] sm:$0xff]
        %v719 = vld [vmem:[#allocation9 + $0x148] sm:$0xff]
        %v720 = vld [vmem:[#allocation9 + $0x150] sm:$0xff]
        %v721 = vld [vmem:[#allocation9 + $0x158] sm:$0xff]
        %v722 = vld [vmem:[#allocation9 + $0x160] sm:$0xff]
        %v723 = vld [vmem:[#allocation9 + $0x168] sm:$0xff]
        %v724 = vld [vmem:[#allocation9 + $0x170] sm:$0xff]
        %v725 = vld [vmem:[#allocation9 + $0x178] sm:$0xff]
        %726 = vmatprep.subr.mxu0 %v679
        %727 = vmatpush1.msra.mxu0 %v678
        %728 = vmatprep.subr.mxu0 %v682
        %729 = vmatpush1.msra.mxu0 %v681
        %730 = vmatprep.subr.mxu0 %v685
        %731 = vmatpush1.msra.mxu0 %v684
        %732 = vmatprep.subr.mxu0 %v688
        %733 = vmatpush1.msra.mxu0 %v687
        %734 = vmatprep.subr.mxu0 %v691
        %735 = vmatpush1.msra.mxu0 %v690
        %736 = vmatprep.subr.mxu0 %v694
        %737 = vmatpush1.msra.mxu0 %v693
        %738 = vmatprep.subr.mxu0 %v697
        %739 = vmatpush1.msra.mxu0 %v696
        %740 = vmatprep.subr.mxu0 %v700
        %741 = vmatpush1.msra.mxu0 %v699
        %742 = vmatprep.subr.mxu0 %v703
        %743 = vmatpush1.msra.mxu0 %v702
        %744 = vmatprep.subr.mxu0 %v706
        %745 = vmatpush1.msra.mxu0 %v705
        %746 = vmatprep.subr.mxu0 %v709
        %747 = vmatpush1.msra.mxu0 %v708
        %748 = vmatprep.subr.mxu0 %v712
        %749 = vmatpush1.msra.mxu0 %v711
        %750 = vmatprep.subr.mxu0 %v715
        %751 = vmatpush1.msra.mxu0 %v714
        %752 = vmatprep.subr.mxu0 %v718
        %753 = vmatpush1.msra.mxu0 %v717
        %754 = vmatprep.subr.mxu0 %v721
        %755 = vmatpush1.msra.mxu0 %v720
        %756 = vmatprep.subr.mxu0 %v724
        %757 = vmatpush1.msra.mxu0 %v723
        %758 = vmatprep.subr.mxu0 0.0
        %759 = vmatpush1.msra.mxu0 0.0
        %760 = vmatprep.subr.mxu0 0.0
        %761 = vmatpush1.msra.mxu0 0.0
        %762 = vmatprep.subr.mxu0 0.0
        %763 = vmatpush1.msra.mxu0 0.0
        %764 = vmatprep.subr.mxu0 0.0
        %765 = vmatpush1.msra.mxu0 0.0
        %766 = vmatprep.subr.mxu0 0.0
        %767 = vmatpush1.msra.mxu0 0.0
        %768 = vmatprep.subr.mxu0 0.0
        %769 = vmatpush1.msra.mxu0 0.0
        %770 = vmatprep.subr.mxu0 0.0
        %771 = vmatpush1.msra.mxu0 0.0
        %772 = vmatprep.subr.mxu0 0.0
        %773 = vmatpush1.msra.mxu0 0.0
        %774 = vmatprep.subr.mxu0 0.0
        %775 = vmatpush1.msra.mxu0 0.0
        %776 = vmatprep.subr.mxu0 0.0
        %777 = vmatpush1.msra.mxu0 0.0
        %778 = vmatprep.subr.mxu0 0.0
        %779 = vmatpush1.msra.mxu0 0.0
        %780 = vmatprep.subr.mxu0 0.0
        %781 = vmatpush1.msra.mxu0 0.0
        %782 = vmatprep.subr.mxu0 0.0
        %783 = vmatpush1.msra.mxu0 0.0
        %784 = vmatprep.subr.mxu0 0.0
        %785 = vmatpush1.msra.mxu0 0.0
        %786 = vmatprep.subr.mxu0 0.0
        %787 = vmatpush1.msra.mxu0 0.0
        %788 = vmatprep.subr.mxu0 0.0
        %789 = vmatpush1.msra.mxu0 0.0
        %790 = vmatprep.mubr.f32.mxu0 0.0
        %791 = vmatmul.mubr.f32.gmra.mrb[0].mxu0 %v509
        %v792 = vpop.f32.mrb[0].mxu0
        %v793 = vadd.f32 0.0, %v792
        %v794 = vpop.f32.mrb[0].mxu0
        %v795 = vadd.f32 0.0, %v794
        %796 = vdwg.mxu0
        %797 = vmatprep.subr.mxu0 0.0
        %798 = vmatpush1.msra.mxu0 %v680
        %799 = vmatprep.subr.mxu0 0.0
        %800 = vmatpush1.msra.mxu0 %v683
        %801 = vmatprep.subr.mxu0 0.0
        %802 = vmatpush1.msra.mxu0 %v686
        %803 = vmatprep.subr.mxu0 0.0
        %804 = vmatpush1.msra.mxu0 %v689
        %805 = vmatprep.subr.mxu0 0.0
        %806 = vmatpush1.msra.mxu0 %v692
        %807 = vmatprep.subr.mxu0 0.0
        %808 = vmatpush1.msra.mxu0 %v695
        %809 = vmatprep.subr.mxu0 0.0
        %810 = vmatpush1.msra.mxu0 %v698
        %811 = vmatprep.subr.mxu0 0.0
        %812 = vmatpush1.msra.mxu0 %v701
        %813 = vmatprep.subr.mxu0 0.0
        %814 = vmatpush1.msra.mxu0 %v704
        %815 = vmatprep.subr.mxu0 0.0
        %816 = vmatpush1.msra.mxu0 %v707
        %817 = vmatprep.subr.mxu0 0.0
        %818 = vmatpush1.msra.mxu0 %v710
        %819 = vmatprep.subr.mxu0 0.0
        %820 = vmatpush1.msra.mxu0 %v713
        %821 = vmatprep.subr.mxu0 0.0
        %822 = vmatpush1.msra.mxu0 %v716
        %823 = vmatprep.subr.mxu0 0.0
        %824 = vmatpush1.msra.mxu0 %v719
        %825 = vmatprep.subr.mxu0 0.0
        %826 = vmatpush1.msra.mxu0 %v722
        %827 = vmatprep.subr.mxu0 0.0
        %828 = vmatpush1.msra.mxu0 %v725
        %829 = vmatprep.subr.mxu0 0.0
        %830 = vmatpush1.msra.mxu0 0.0
        %831 = vmatprep.subr.mxu0 0.0
        %832 = vmatpush1.msra.mxu0 0.0
        %833 = vmatprep.subr.mxu0 0.0
        %834 = vmatpush1.msra.mxu0 0.0
        %835 = vmatprep.subr.mxu0 0.0
        %836 = vmatpush1.msra.mxu0 0.0
        %837 = vmatprep.subr.mxu0 0.0
        %838 = vmatpush1.msra.mxu0 0.0
        %839 = vmatprep.subr.mxu0 0.0
        %840 = vmatpush1.msra.mxu0 0.0
        %841 = vmatprep.subr.mxu0 0.0
        %842 = vmatpush1.msra.mxu0 0.0
        %843 = vmatprep.subr.mxu0 0.0
        %844 = vmatpush1.msra.mxu0 0.0
        %845 = vmatprep.subr.mxu0 0.0
        %846 = vmatpush1.msra.mxu0 0.0
        %847 = vmatprep.subr.mxu0 0.0
        %848 = vmatpush1.msra.mxu0 0.0
        %849 = vmatprep.subr.mxu0 0.0
        %850 = vmatpush1.msra.mxu0 0.0
        %851 = vmatprep.subr.mxu0 0.0
        %852 = vmatpush1.msra.mxu0 0.0
        %853 = vmatprep.subr.mxu0 0.0
        %854 = vmatpush1.msra.mxu0 0.0
        %855 = vmatprep.subr.mxu0 0.0
        %856 = vmatpush1.msra.mxu0 0.0
        %857 = vmatprep.subr.mxu0 0.0
        %858 = vmatpush1.msra.mxu0 0.0
        %859 = vmatprep.subr.mxu0 0.0
        %860 = vmatpush1.msra.mxu0 0.0
        %861 = vmatprep.mubr.f32.mxu0 0.0
        %862 = vmatmul.mubr.f32.gmra.mrb[0].mxu0 %v509
        %v863 = vpop.f32.mrb[0].mxu0
        %v864 = vadd.f32 0.0, %v863
        %v865 = vpop.f32.mrb[0].mxu0
        %866 = vdwg.mxu0
        %v867 = vadd.f32 %v604, %v793
        %v868 = vxor.u32 %v867, 2147483648
        %v869 = vmul.f32 %v868, 1.442695
        %v870 = vpow.pop %v869
        %v871 = vadd.f32 %v870, 1.0
        %v872 = vrcp.pop %v871
        %v873 = vmul.f32 1.0, %v872
        %v874 = vadd.f32 %v606, %v795
        %v875 = vxor.u32 %v874, 2147483648
        %v876 = vmul.f32 %v875, 1.442695
        %v877 = vpow.pop %v876
        %v878 = vadd.f32 %v877, 1.0
        %v879 = vrcp.pop %v878
        %v880 = vmul.f32 1.0, %v879
        %v881 = vld [vmem:[%s6] sm:$0x1]
        %v882 = vadd.f32 %v864, %v881
        %v883 = vmul.f32 %v873, %v882
        %v884 = vadd.f32 %v675, %v883
        %v885 = vtanh.pop %v884
        %v886 = vsub.f32 %v509, %v885
        %v887 = vmul.f32 %v880, %v886
        %v888 = vadd.f32 %v885, %v887
        %v889 = vld [vmem:[%s14 + $0x1] sm:$0x1]
        %v890 = vld [vmem:[#allocation10] sm:$0xff]
        %v891 = vld [vmem:[#allocation10 + $0x8] sm:$0xff]
        %v892 = vld [vmem:[#allocation10 + $0x10] sm:$0xff]
        %v893 = vld [vmem:[#allocation10 + $0x18] sm:$0xff]
        %v894 = vld [vmem:[#allocation10 + $0x20] sm:$0xff]
        %v895 = vld [vmem:[#allocation10 + $0x28] sm:$0xff]
        %v896 = vld [vmem:[#allocation10 + $0x30] sm:$0xff]
        %v897 = vld [vmem:[#allocation10 + $0x38] sm:$0xff]
        %v898 = vld [vmem:[#allocation10 + $0x40] sm:$0xff]
        %v899 = vld [vmem:[#allocation10 + $0x48] sm:$0xff]
        %v900 = vld [vmem:[#allocation10 + $0x50] sm:$0xff]
        %v901 = vld [vmem:[#allocation10 + $0x58] sm:$0xff]
        %v902 = vld [vmem:[#allocation10 + $0x60] sm:$0xff]
        %v903 = vld [vmem:[#allocation10 + $0x68] sm:$0xff]
        %v904 = vld [vmem:[#allocation10 + $0x70] sm:$0xff]
        %v905 = vld [vmem:[#allocation10 + $0x78] sm:$0xff]
        %v906 = vld [vmem:[#allocation10 + $0x80] sm:$0xff]
        %v907 = vld [vmem:[#allocation10 + $0x88] sm:$0xff]
        %v908 = vld [vmem:[#allocation10 + $0x90] sm:$0xff]
        %v909 = vld [vmem:[#allocation10 + $0x98] sm:$0xff]
        %v910 = vld [vmem:[#allocation10 + $0xa0] sm:$0xff]
        %v911 = vld [vmem:[#allocation10 + $0xa8] sm:$0xff]
        %v912 = vld [vmem:[#allocation10 + $0xb0] sm:$0xff]
        %v913 = vld [vmem:[#allocation10 + $0xb8] sm:$0xff]
        %v914 = vld [vmem:[#allocation10 + $0xc0] sm:$0xff]
        %v915 = vld [vmem:[#allocation10 + $0xc8] sm:$0xff]
        %v916 = vld [vmem:[#allocation10 + $0xd0] sm:$0xff]
        %v917 = vld [vmem:[#allocation10 + $0xd8] sm:$0xff]
        %v918 = vld [vmem:[#allocation10 + $0xe0] sm:$0xff]
        %v919 = vld [vmem:[#allocation10 + $0xe8] sm:$0xff]
        %v920 = vld [vmem:[#allocation10 + $0xf0] sm:$0xff]
        %v921 = vld [vmem:[#allocation10 + $0xf8] sm:$0xff]
        %v922 = vld [vmem:[#allocation10 + $0x100] sm:$0xff]
        %v923 = vld [vmem:[#allocation10 + $0x108] sm:$0xff]
        %v924 = vld [vmem:[#allocation10 + $0x110] sm:$0xff]
        %v925 = vld [vmem:[#allocation10 + $0x118] sm:$0xff]
        %v926 = vld [vmem:[#allocation10 + $0x120] sm:$0xff]
        %v927 = vld [vmem:[#allocation10 + $0x128] sm:$0xff]
        %v928 = vld [vmem:[#allocation10 + $0x130] sm:$0xff]
        %v929 = vld [vmem:[#allocation10 + $0x138] sm:$0xff]
        %v930 = vld [vmem:[#allocation10 + $0x140] sm:$0xff]
        %v931 = vld [vmem:[#allocation10 + $0x148] sm:$0xff]
        %v932 = vld [vmem:[#allocation10 + $0x150] sm:$0xff]
        %v933 = vld [vmem:[#allocation10 + $0x158] sm:$0xff]
        %v934 = vld [vmem:[#allocation10 + $0x160] sm:$0xff]
        %v935 = vld [vmem:[#allocation10 + $0x168] sm:$0xff]
        %v936 = vld [vmem:[#allocation10 + $0x170] sm:$0xff]
        %v937 = vld [vmem:[#allocation10 + $0x178] sm:$0xff]
        %v938 = vld [vmem:[%s9] sm:$0x7]
        %v940 = vlaneseq
        %v941 = vshrl.u32 %v940, 7
        %v942 = vsub.s32 0, %v941
        %v943 = vrot.slane %v938, %v942
        %v944 = vlaneseq
        %v945 = vshrl.u32 %v944, 7
        %v946 = vsub.s32 1, %v945
        %v947 = vrot.slane %v938, %v946
        %v948 = vlaneseq
        %v949 = vshrl.u32 %v948, 7
        %v950 = vsub.s32 2, %v949
        %v951 = vrot.slane %v938, %v950
        %955 = vmatprep.subr.mxu0 %v891
        %956 = vmatpush1.msra.mxu0 %v890
        %957 = vmatprep.subr.mxu0 %v894
        %958 = vmatpush1.msra.mxu0 %v893
        %959 = vmatprep.subr.mxu0 %v897
        %960 = vmatpush1.msra.mxu0 %v896
        %961 = vmatprep.subr.mxu0 %v900
        %962 = vmatpush1.msra.mxu0 %v899
        %963 = vmatprep.subr.mxu0 %v903
        %964 = vmatpush1.msra.mxu0 %v902
        %965 = vmatprep.subr.mxu0 %v906
        %966 = vmatpush1.msra.mxu0 %v905
        %967 = vmatprep.subr.mxu0 %v909
        %968 = vmatpush1.msra.mxu0 %v908
        %969 = vmatprep.subr.mxu0 %v912
        %970 = vmatpush1.msra.mxu0 %v911
        %971 = vmatprep.subr.mxu0 %v915
        %972 = vmatpush1.msra.mxu0 %v914
        %973 = vmatprep.subr.mxu0 %v918
        %974 = vmatpush1.msra.mxu0 %v917
        %975 = vmatprep.subr.mxu0 %v921
        %976 = vmatpush1.msra.mxu0 %v920
        %977 = vmatprep.subr.mxu0 %v924
        %978 = vmatpush1.msra.mxu0 %v923
        %979 = vmatprep.subr.mxu0 %v927
        %980 = vmatpush1.msra.mxu0 %v926
        %981 = vmatprep.subr.mxu0 %v930
        %982 = vmatpush1.msra.mxu0 %v929
        %983 = vmatprep.subr.mxu0 %v933
        %984 = vmatpush1.msra.mxu0 %v932
        %985 = vmatprep.subr.mxu0 %v936
        %986 = vmatpush1.msra.mxu0 %v935
        %987 = vmatprep.subr.mxu0 0.0
        %988 = vmatpush1.msra.mxu0 0.0
        %989 = vmatprep.subr.mxu0 0.0
        %990 = vmatpush1.msra.mxu0 0.0
        %991 = vmatprep.subr.mxu0 0.0
        %992 = vmatpush1.msra.mxu0 0.0
        %993 = vmatprep.subr.mxu0 0.0
        %994 = vmatpush1.msra.mxu0 0.0
        %995 = vmatprep.subr.mxu0 0.0
        %996 = vmatpush1.msra.mxu0 0.0
        %997 = vmatprep.subr.mxu0 0.0
        %998 = vmatpush1.msra.mxu0 0.0
        %999 = vmatprep.subr.mxu0 0.0
        %1000 = vmatpush1.msra.mxu0 0.0
        %1001 = vmatprep.subr.mxu0 0.0
        %1002 = vmatpush1.msra.mxu0 0.0
        %1003 = vmatprep.subr.mxu0 0.0
        %1004 = vmatpush1.msra.mxu0 0.0
        %1005 = vmatprep.subr.mxu0 0.0
        %1006 = vmatpush1.msra.mxu0 0.0
        %1007 = vmatprep.subr.mxu0 0.0
        %1008 = vmatpush1.msra.mxu0 0.0
        %1009 = vmatprep.subr.mxu0 0.0
        %1010 = vmatpush1.msra.mxu0 0.0
        %1011 = vmatprep.subr.mxu0 0.0
        %1012 = vmatpush1.msra.mxu0 0.0
        %1013 = vmatprep.subr.mxu0 0.0
        %1014 = vmatpush1.msra.mxu0 0.0
        %1015 = vmatprep.subr.mxu0 0.0
        %1016 = vmatpush1.msra.mxu0 0.0
        %1017 = vmatprep.subr.mxu0 0.0
        %1018 = vmatpush1.msra.mxu0 0.0
        %1019 = vmatprep.mubr.f32.mxu0 0.0
        %1020 = vmatmul.mubr.f32.gmra.mrb[0].mxu0 %v888
        %v1021 = vpop.f32.mrb[0].mxu0
        %v1022 = vadd.f32 %v943, %v1021
        %v1023 = vpop.f32.mrb[0].mxu0
        %v1024 = vadd.f32 %v947, %v1023
        %1025 = vdwg.mxu0
        %1026 = vmatprep.subr.mxu0 0.0
        %1027 = vmatpush1.msra.mxu0 %v892
        %1028 = vmatprep.subr.mxu0 0.0
        %1029 = vmatpush1.msra.mxu0 %v895
        %1030 = vmatprep.subr.mxu0 0.0
        %1031 = vmatpush1.msra.mxu0 %v898
        %1032 = vmatprep.subr.mxu0 0.0
        %1033 = vmatpush1.msra.mxu0 %v901
        %1034 = vmatprep.subr.mxu0 0.0
        %1035 = vmatpush1.msra.mxu0 %v904
        %1036 = vmatprep.subr.mxu0 0.0
        %1037 = vmatpush1.msra.mxu0 %v907
        %1038 = vmatprep.subr.mxu0 0.0
        %1039 = vmatpush1.msra.mxu0 %v910
        %1040 = vmatprep.subr.mxu0 0.0
        %1041 = vmatpush1.msra.mxu0 %v913
        %1042 = vmatprep.subr.mxu0 0.0
        %1043 = vmatpush1.msra.mxu0 %v916
        %1044 = vmatprep.subr.mxu0 0.0
        %1045 = vmatpush1.msra.mxu0 %v919
        %1046 = vmatprep.subr.mxu0 0.0
        %1047 = vmatpush1.msra.mxu0 %v922
        %1048 = vmatprep.subr.mxu0 0.0
        %1049 = vmatpush1.msra.mxu0 %v925
        %1050 = vmatprep.subr.mxu0 0.0
        %1051 = vmatpush1.msra.mxu0 %v928
        %1052 = vmatprep.subr.mxu0 0.0
        %1053 = vmatpush1.msra.mxu0 %v931
        %1054 = vmatprep.subr.mxu0 0.0
        %1055 = vmatpush1.msra.mxu0 %v934
        %1056 = vmatprep.subr.mxu0 0.0
        %1057 = vmatpush1.msra.mxu0 %v937
        %1058 = vmatprep.subr.mxu0 0.0
        %1059 = vmatpush1.msra.mxu0 0.0
        %1060 = vmatprep.subr.mxu0 0.0
        %1061 = vmatpush1.msra.mxu0 0.0
        %1062 = vmatprep.subr.mxu0 0.0
        %1063 = vmatpush1.msra.mxu0 0.0
        %1064 = vmatprep.subr.mxu0 0.0
        %1065 = vmatpush1.msra.mxu0 0.0
        %1066 = vmatprep.subr.mxu0 0.0
        %1067 = vmatpush1.msra.mxu0 0.0
        %1068 = vmatprep.subr.mxu0 0.0
        %1069 = vmatpush1.msra.mxu0 0.0
        %1070 = vmatprep.subr.mxu0 0.0
        %1071 = vmatpush1.msra.mxu0 0.0
        %1072 = vmatprep.subr.mxu0 0.0
        %1073 = vmatpush1.msra.mxu0 0.0
        %1074 = vmatprep.subr.mxu0 0.0
        %1075 = vmatpush1.msra.mxu0 0.0
        %1076 = vmatprep.subr.mxu0 0.0
        %1077 = vmatpush1.msra.mxu0 0.0
        %1078 = vmatprep.subr.mxu0 0.0
        %1079 = vmatpush1.msra.mxu0 0.0
        %1080 = vmatprep.subr.mxu0 0.0
        %1081 = vmatpush1.msra.mxu0 0.0
        %1082 = vmatprep.subr.mxu0 0.0
        %1083 = vmatpush1.msra.mxu0 0.0
        %1084 = vmatprep.subr.mxu0 0.0
        %1085 = vmatpush1.msra.mxu0 0.0
        %1086 = vmatprep.subr.mxu0 0.0
        %1087 = vmatpush1.msra.mxu0 0.0
        %1088 = vmatprep.subr.mxu0 0.0
        %1089 = vmatpush1.msra.mxu0 0.0
        %1090 = vmatprep.mubr.f32.mxu0 0.0
        %1091 = vmatmul.mubr.f32.gmra.mrb[0].mxu0 %v888
        %v1092 = vpop.f32.mrb[0].mxu0
        %v1093 = vadd.f32 %v951, %v1092
        %v1094 = vpop.f32.mrb[0].mxu0
        %1095 = vdwg.mxu0
        %v1096 = vld [vmem:[#allocation12] sm:$0xff]
        %v1097 = vld [vmem:[#allocation12 + $0x8] sm:$0xff]
        %v1098 = vld [vmem:[#allocation12 + $0x10] sm:$0xff]
        %v1099 = vld [vmem:[#allocation12 + $0x18] sm:$0xff]
        %v1100 = vld [vmem:[#allocation12 + $0x20] sm:$0xff]
        %v1101 = vld [vmem:[#allocation12 + $0x28] sm:$0xff]
        %v1102 = vld [vmem:[#allocation12 + $0x30] sm:$0xff]
        %v1103 = vld [vmem:[#allocation12 + $0x38] sm:$0xff]
        %v1104 = vld [vmem:[#allocation12 + $0x40] sm:$0xff]
        %v1105 = vld [vmem:[#allocation12 + $0x48] sm:$0xff]
        %v1106 = vld [vmem:[#allocation12 + $0x50] sm:$0xff]
        %v1107 = vld [vmem:[#allocation12 + $0x58] sm:$0xff]
        %v1108 = vld [vmem:[#allocation12 + $0x60] sm:$0xff]
        %v1109 = vld [vmem:[#allocation12 + $0x68] sm:$0xff]
        %v1110 = vld [vmem:[#allocation12 + $0x70] sm:$0xff]
        %v1111 = vld [vmem:[#allocation12 + $0x78] sm:$0xff]
        %v1112 = vld [vmem:[#allocation12 + $0x80] sm:$0xff]
        %v1113 = vld [vmem:[#allocation12 + $0x88] sm:$0xff]
        %v1114 = vld [vmem:[#allocation12 + $0x90] sm:$0xff]
        %v1115 = vld [vmem:[#allocation12 + $0x98] sm:$0xff]
        %v1116 = vld [vmem:[#allocation12 + $0xa0] sm:$0xff]
        %v1117 = vld [vmem:[#allocation12 + $0xa8] sm:$0xff]
        %v1118 = vld [vmem:[#allocation12 + $0xb0] sm:$0xff]
        %v1119 = vld [vmem:[#allocation12 + $0xb8] sm:$0xff]
        %v1120 = vld [vmem:[#allocation12 + $0xc0] sm:$0xff]
        %v1121 = vld [vmem:[#allocation12 + $0xc8] sm:$0xff]
        %v1122 = vld [vmem:[#allocation12 + $0xd0] sm:$0xff]
        %v1123 = vld [vmem:[#allocation12 + $0xd8] sm:$0xff]
        %v1124 = vld [vmem:[#allocation12 + $0xe0] sm:$0xff]
        %v1125 = vld [vmem:[#allocation12 + $0xe8] sm:$0xff]
        %v1126 = vld [vmem:[#allocation12 + $0xf0] sm:$0xff]
        %v1127 = vld [vmem:[#allocation12 + $0xf8] sm:$0xff]
        %v1128 = vld [vmem:[#allocation12 + $0x100] sm:$0xff]
        %v1129 = vld [vmem:[#allocation12 + $0x108] sm:$0xff]
        %v1130 = vld [vmem:[#allocation12 + $0x110] sm:$0xff]
        %v1131 = vld [vmem:[#allocation12 + $0x118] sm:$0xff]
        %v1132 = vld [vmem:[#allocation12 + $0x120] sm:$0xff]
        %v1133 = vld [vmem:[#allocation12 + $0x128] sm:$0xff]
        %v1134 = vld [vmem:[#allocation12 + $0x130] sm:$0xff]
        %v1135 = vld [vmem:[#allocation12 + $0x138] sm:$0xff]
        %v1136 = vld [vmem:[#allocation12 + $0x140] sm:$0xff]
        %v1137 = vld [vmem:[#allocation12 + $0x148] sm:$0xff]
        %v1138 = vld [vmem:[#allocation12 + $0x150] sm:$0xff]
        %v1139 = vld [vmem:[#allocation12 + $0x158] sm:$0xff]
        %v1140 = vld [vmem:[#allocation12 + $0x160] sm:$0xff]
        %v1141 = vld [vmem:[#allocation12 + $0x168] sm:$0xff]
        %v1142 = vld [vmem:[#allocation12 + $0x170] sm:$0xff]
        %v1143 = vld [vmem:[#allocation12 + $0x178] sm:$0xff]
        %1144 = vmatprep.subr.mxu0 %v1097
        %1145 = vmatpush1.msra.mxu0 %v1096
        %1146 = vmatprep.subr.mxu0 %v1100
        %1147 = vmatpush1.msra.mxu0 %v1099
        %1148 = vmatprep.subr.mxu0 %v1103
        %1149 = vmatpush1.msra.mxu0 %v1102
        %1150 = vmatprep.subr.mxu0 %v1106
        %1151 = vmatpush1.msra.mxu0 %v1105
        %1152 = vmatprep.subr.mxu0 %v1109
        %1153 = vmatpush1.msra.mxu0 %v1108
        %1154 = vmatprep.subr.mxu0 %v1112
        %1155 = vmatpush1.msra.mxu0 %v1111
        %1156 = vmatprep.subr.mxu0 %v1115
        %1157 = vmatpush1.msra.mxu0 %v1114
        %1158 = vmatprep.subr.mxu0 %v1118
        %1159 = vmatpush1.msra.mxu0 %v1117
        %1160 = vmatprep.subr.mxu0 %v1121
        %1161 = vmatpush1.msra.mxu0 %v1120
        %1162 = vmatprep.subr.mxu0 %v1124
        %1163 = vmatpush1.msra.mxu0 %v1123
        %1164 = vmatprep.subr.mxu0 %v1127
        %1165 = vmatpush1.msra.mxu0 %v1126
        %1166 = vmatprep.subr.mxu0 %v1130
        %1167 = vmatpush1.msra.mxu0 %v1129
        %1168 = vmatprep.subr.mxu0 %v1133
        %1169 = vmatpush1.msra.mxu0 %v1132
        %1170 = vmatprep.subr.mxu0 %v1136
        %1171 = vmatpush1.msra.mxu0 %v1135
        %1172 = vmatprep.subr.mxu0 %v1139
        %1173 = vmatpush1.msra.mxu0 %v1138
        %1174 = vmatprep.subr.mxu0 %v1142
        %1175 = vmatpush1.msra.mxu0 %v1141
        %1176 = vmatprep.subr.mxu0 0.0
        %1177 = vmatpush1.msra.mxu0 0.0
        %1178 = vmatprep.subr.mxu0 0.0
        %1179 = vmatpush1.msra.mxu0 0.0
        %1180 = vmatprep.subr.mxu0 0.0
        %1181 = vmatpush1.msra.mxu0 0.0
        %1182 = vmatprep.subr.mxu0 0.0
        %1183 = vmatpush1.msra.mxu0 0.0
        %1184 = vmatprep.subr.mxu0 0.0
        %1185 = vmatpush1.msra.mxu0 0.0
        %1186 = vmatprep.subr.mxu0 0.0
        %1187 = vmatpush1.msra.mxu0 0.0
        %1188 = vmatprep.subr.mxu0 0.0
        %1189 = vmatpush1.msra.mxu0 0.0
        %1190 = vmatprep.subr.mxu0 0.0
        %1191 = vmatpush1.msra.mxu0 0.0
        %1192 = vmatprep.subr.mxu0 0.0
        %1193 = vmatpush1.msra.mxu0 0.0
        %1194 = vmatprep.subr.mxu0 0.0
        %1195 = vmatpush1.msra.mxu0 0.0
        %1196 = vmatprep.subr.mxu0 0.0
        %1197 = vmatpush1.msra.mxu0 0.0
        %1198 = vmatprep.subr.mxu0 0.0
        %1199 = vmatpush1.msra.mxu0 0.0
        %1200 = vmatprep.subr.mxu0 0.0
        %1201 = vmatpush1.msra.mxu0 0.0
        %1202 = vmatprep.subr.mxu0 0.0
        %1203 = vmatpush1.msra.mxu0 0.0
        %1204 = vmatprep.subr.mxu0 0.0
        %1205 = vmatpush1.msra.mxu0 0.0
        %1206 = vmatprep.subr.mxu0 0.0
        %1207 = vmatpush1.msra.mxu0 0.0
        %1208 = vmatprep.mubr.f32.mxu0 0.0
        %1209 = vmatmul.mubr.f32.gmra.mrb[0].mxu0 %v889
        %v1210 = vpop.f32.mrb[0].mxu0
        %v1211 = vadd.f32 0.0, %v1210
        %v1212 = vpop.f32.mrb[0].mxu0
        %v1213 = vadd.f32 0.0, %v1212
        %1214 = vdwg.mxu0
        %1215 = vmatprep.subr.mxu0 0.0
        %1216 = vmatpush1.msra.mxu0 %v1098
        %1217 = vmatprep.subr.mxu0 0.0
        %1218 = vmatpush1.msra.mxu0 %v1101
        %1219 = vmatprep.subr.mxu0 0.0
        %1220 = vmatpush1.msra.mxu0 %v1104
        %1221 = vmatprep.subr.mxu0 0.0
        %1222 = vmatpush1.msra.mxu0 %v1107
        %1223 = vmatprep.subr.mxu0 0.0
        %1224 = vmatpush1.msra.mxu0 %v1110
        %1225 = vmatprep.subr.mxu0 0.0
        %1226 = vmatpush1.msra.mxu0 %v1113
        %1227 = vmatprep.subr.mxu0 0.0
        %1228 = vmatpush1.msra.mxu0 %v1116
        %1229 = vmatprep.subr.mxu0 0.0
        %1230 = vmatpush1.msra.mxu0 %v1119
        %1231 = vmatprep.subr.mxu0 0.0
        %1232 = vmatpush1.msra.mxu0 %v1122
        %1233 = vmatprep.subr.mxu0 0.0
        %1234 = vmatpush1.msra.mxu0 %v1125
        %1235 = vmatprep.subr.mxu0 0.0
        %1236 = vmatpush1.msra.mxu0 %v1128
        %1237 = vmatprep.subr.mxu0 0.0
        %1238 = vmatpush1.msra.mxu0 %v1131
        %1239 = vmatprep.subr.mxu0 0.0
        %1240 = vmatpush1.msra.mxu0 %v1134
        %1241 = vmatprep.subr.mxu0 0.0
        %1242 = vmatpush1.msra.mxu0 %v1137
        %1243 = vmatprep.subr.mxu0 0.0
        %1244 = vmatpush1.msra.mxu0 %v1140
        %1245 = vmatprep.subr.mxu0 0.0
        %1246 = vmatpush1.msra.mxu0 %v1143
        %1247 = vmatprep.subr.mxu0 0.0
        %1248 = vmatpush1.msra.mxu0 0.0
        %1249 = vmatprep.subr.mxu0 0.0
        %1250 = vmatpush1.msra.mxu0 0.0
        %1251 = vmatprep.subr.mxu0 0.0
        %1252 = vmatpush1.msra.mxu0 0.0
        %1253 = vmatprep.subr.mxu0 0.0
        %1254 = vmatpush1.msra.mxu0 0.0
        %1255 = vmatprep.subr.mxu0 0.0
        %1256 = vmatpush1.msra.mxu0 0.0
        %1257 = vmatprep.subr.mxu0 0.0
        %1258 = vmatpush1.msra.mxu0 0.0
        %1259 = vmatprep.subr.mxu0 0.0
        %1260 = vmatpush1.msra.mxu0 0.0
        %1261 = vmatprep.subr.mxu0 0.0
        %1262 = vmatpush1.msra.mxu0 0.0
        %1263 = vmatprep.subr.mxu0 0.0
        %1264 = vmatpush1.msra.mxu0 0.0
        %1265 = vmatprep.subr.mxu0 0.0
        %1266 = vmatpush1.msra.mxu0 0.0
        %1267 = vmatprep.subr.mxu0 0.0
        %1268 = vmatpush1.msra.mxu0 0.0
        %1269 = vmatprep.subr.mxu0 0.0
        %1270 = vmatpush1.msra.mxu0 0.0
        %1271 = vmatprep.subr.mxu0 0.0
        %1272 = vmatpush1.msra.mxu0 0.0
        %1273 = vmatprep.subr.mxu0 0.0
        %1274 = vmatpush1.msra.mxu0 0.0
        %1275 = vmatprep.subr.mxu0 0.0
        %1276 = vmatpush1.msra.mxu0 0.0
        %1277 = vmatprep.subr.mxu0 0.0
        %1278 = vmatpush1.msra.mxu0 0.0
        %1279 = vmatprep.mubr.f32.mxu0 0.0
        %1280 = vmatmul.mubr.f32.gmra.mrb[0].mxu0 %v889
        %v1281 = vpop.f32.mrb[0].mxu0
        %v1282 = vadd.f32 0.0, %v1281
        %v1283 = vpop.f32.mrb[0].mxu0
        %1284 = vdwg.mxu0
        %v1285 = vadd.f32 %v1022, %v1211
        %v1286 = vxor.u32 %v1285, 2147483648
        %v1287 = vmul.f32 %v1286, 1.442695
        %v1288 = vpow.pop %v1287
        %v1289 = vadd.f32 %v1288, 1.0
        %v1290 = vrcp.pop %v1289
        %v1291 = vmul.f32 1.0, %v1290
        %v1292 = vadd.f32 %v1024, %v1213
        %v1293 = vxor.u32 %v1292, 2147483648
        %v1294 = vmul.f32 %v1293, 1.442695
        %v1295 = vpow.pop %v1294
        %v1296 = vadd.f32 %v1295, 1.0
        %v1297 = vrcp.pop %v1296
        %v1298 = vmul.f32 1.0, %v1297
        %v1299 = vld [vmem:[%s10] sm:$0x1]
        %v1300 = vadd.f32 %v1282, %v1299
        %v1301 = vmul.f32 %v1291, %v1300
        %v1302 = vadd.f32 %v1093, %v1301
        %v1303 = vtanh.pop %v1302
        %v1304 = vsub.f32 %v889, %v1303
        %v1305 = vmul.f32 %v1298, %v1304
        %v1306 = vadd.f32 %v1303, %v1305
        %1307 = vst [vmem:[%s14] sm:$0x1] %v888
        %1308 = vst [vmem:[%s14 + $0x1] sm:$0x1] %v1306
        %v1309 = vld [vmem:[#allocation13] sm:$0xff]
        %v1310 = vld [vmem:[#allocation13 + $0x8] sm:$0xff]
        %v1311 = vld [vmem:[#allocation13 + $0x10] sm:$0xff]
        %v1312 = vld [vmem:[#allocation13 + $0x18] sm:$0xff]
        %v1313 = vld [vmem:[#allocation13 + $0x20] sm:$0xff]
        %v1314 = vld [vmem:[#allocation13 + $0x28] sm:$0xff]
        %v1315 = vld [vmem:[#allocation13 + $0x30] sm:$0xff]
        %v1316 = vld [vmem:[#allocation13 + $0x38] sm:$0xff]
        %v1317 = vld [vmem:[#allocation13 + $0x40] sm:$0xff]
        %v1318 = vld [vmem:[#allocation13 + $0x48] sm:$0xff]
        %v1319 = vld [vmem:[#allocation13 + $0x50] sm:$0xff]
        %v1320 = vld [vmem:[#allocation13 + $0x58] sm:$0xff]
        %v1321 = vld [vmem:[#allocation13 + $0x60] sm:$0xff]
        %v1322 = vld [vmem:[#allocation13 + $0x68] sm:$0xff]
        %v1323 = vld [vmem:[#allocation13 + $0x70] sm:$0xff]
        %v1324 = vld [vmem:[#allocation13 + $0x78] sm:$0xff]
        %v1325 = vld [vmem:[%s12] sm:$0x1]
        %1326 = vmatprep.subr.mxu0 0.0
        %1327 = vmatpush1.msra.mxu0 %v1309
        %1328 = vmatprep.subr.mxu0 0.0
        %1329 = vmatpush1.msra.mxu0 %v1310
        %1330 = vmatprep.subr.mxu0 0.0
        %1331 = vmatpush1.msra.mxu0 %v1311
        %1332 = vmatprep.subr.mxu0 0.0
        %1333 = vmatpush1.msra.mxu0 %v1312
        %1334 = vmatprep.subr.mxu0 0.0
        %1335 = vmatpush1.msra.mxu0 %v1313
        %1336 = vmatprep.subr.mxu0 0.0
        %1337 = vmatpush1.msra.mxu0 %v1314
        %1338 = vmatprep.subr.mxu0 0.0
        %1339 = vmatpush1.msra.mxu0 %v1315
        %1340 = vmatprep.subr.mxu0 0.0
        %1341 = vmatpush1.msra.mxu0 %v1316
        %1342 = vmatprep.subr.mxu0 0.0
        %1343 = vmatpush1.msra.mxu0 %v1317
        %1344 = vmatprep.subr.mxu0 0.0
        %1345 = vmatpush1.msra.mxu0 %v1318
        %1346 = vmatprep.subr.mxu0 0.0
        %1347 = vmatpush1.msra.mxu0 %v1319
        %1348 = vmatprep.subr.mxu0 0.0
        %1349 = vmatpush1.msra.mxu0 %v1320
        %1350 = vmatprep.subr.mxu0 0.0
        %1351 = vmatpush1.msra.mxu0 %v1321
        %1352 = vmatprep.subr.mxu0 0.0
        %1353 = vmatpush1.msra.mxu0 %v1322
        %1354 = vmatprep.subr.mxu0 0.0
        %1355 = vmatpush1.msra.mxu0 %v1323
        %1356 = vmatprep.subr.mxu0 0.0
        %1357 = vmatpush1.msra.mxu0 %v1324
        %1358 = vmatprep.subr.mxu0 0.0
        %1359 = vmatpush1.msra.mxu0 0.0
        %1360 = vmatprep.subr.mxu0 0.0
        %1361 = vmatpush1.msra.mxu0 0.0
        %1362 = vmatprep.subr.mxu0 0.0
        %1363 = vmatpush1.msra.mxu0 0.0
        %1364 = vmatprep.subr.mxu0 0.0
        %1365 = vmatpush1.msra.mxu0 0.0
        %1366 = vmatprep.subr.mxu0 0.0
        %1367 = vmatpush1.msra.mxu0 0.0
        %1368 = vmatprep.subr.mxu0 0.0
        %1369 = vmatpush1.msra.mxu0 0.0
        %1370 = vmatprep.subr.mxu0 0.0
        %1371 = vmatpush1.msra.mxu0 0.0
        %1372 = vmatprep.subr.mxu0 0.0
        %1373 = vmatpush1.msra.mxu0 0.0
        %1374 = vmatprep.subr.mxu0 0.0
        %1375 = vmatpush1.msra.mxu0 0.0
        %1376 = vmatprep.subr.mxu0 0.0
        %1377 = vmatpush1.msra.mxu0 0.0
        %1378 = vmatprep.subr.mxu0 0.0
        %1379 = vmatpush1.msra.mxu0 0.0
        %1380 = vmatprep.subr.mxu0 0.0
        %1381 = vmatpush1.msra.mxu0 0.0
        %1382 = vmatprep.subr.mxu0 0.0
        %1383 = vmatpush1.msra.mxu0 0.0
        %1384 = vmatprep.subr.mxu0 0.0
        %1385 = vmatpush1.msra.mxu0 0.0
        %1386 = vmatprep.subr.mxu0 0.0
        %1387 = vmatpush1.msra.mxu0 0.0
        %1388 = vmatprep.subr.mxu0 0.0
        %1389 = vmatpush1.msra.mxu0 0.0
        %1390 = vmatprep.mubr.f32.mxu0 0.0
        %1391 = vmatmul.mubr.f32.gmra.mrb[0].mxu0 %v1306
        %v1392 = vpop.f32.mrb[0].mxu0
        %v1393 = vadd.f32 %v1325, %v1392
        %v1394 = vpop.f32.mrb[0].mxu0
        %1395 = vdwg.mxu0
        %s1396 = scalar_lea.vmem [#allocation15], %s37
        %1397 = vst [vmem:[%s1396] sm:$0x1] %v1393
        // Predicated region
        $region97: #{gru_rnn_decode.1} parent=67 // pred_check
          %p1398 = pneg %p302
        $region98: #{gru_rnn_decode.1} parent=67 // pred_check_branch
          %1400 = sbr.rel (%p1398) target = $region100
        $region99: #{gru_rnn_decode.1} parent=67 // pred_region
          %s1402 = ssub.s32 128, 128
          %1403 = vsyncadd [#allocation6], %s1402
          %s1405 = sshll.u32 [#allocation15], 4
          %s1406 = int_to_ptr.vmem [resolvable:$true] %s1405
          %1408 = dma.vmem_to_hbm [thread:$0]  %s1406, 128, %s13, [#allocation6]
        $region100: #{gru_rnn_decode.1} parent=67 // pred_fallthru
          _
        // Predicated region
        $region101: #{gru_rnn_decode.1} parent=67 // pred_check
          %p1409 = pneg %p323
        $region102: #{gru_rnn_decode.1} parent=67 // pred_check_branch
          %1411 = sbr.rel (%p1409) target = $region104
        $region103: #{gru_rnn_decode.1} parent=67 // pred_region
          _
        $region104: #{gru_rnn_decode.1} parent=67 // pred_fallthru
          _
        // Predicated region
        $region105: #{gru_rnn_decode.1} parent=67 // pred_check
          %p1412 = pneg %p302
        $region106: #{gru_rnn_decode.1} parent=67 // pred_check_branch
          %1414 = sbr.rel (%p1412) target = $region108
        $region107: #{gru_rnn_decode.1} parent=67 // pred_region
          %1415 = dma.done [#allocation6], 128
        $region108: #{gru_rnn_decode.1} parent=67 // pred_fallthru
          _
        // Predicated region
        $region109: #{gru_rnn_decode.1} parent=67 // pred_check
          %p1416 = pneg %p323
        $region110: #{gru_rnn_decode.1} parent=67 // pred_check_branch
          %1418 = sbr.rel (%p1416) target = $region112
        $region111: #{gru_rnn_decode.1} parent=67 // pred_region
          _
        $region112: #{gru_rnn_decode.1} parent=67 // pred_fallthru
          _
      $region68: #{gru_rnn_decode.1} parent=5 // pred_fallthru
        _
      %p1419 = scmp.le.s32.totalorder 2, %s32
      // Predicated region
      $region113: #{gru_rnn_decode.1} parent=5 // pred_check
        %p1420 = pneg %p1419
      $region114: #{gru_rnn_decode.1} parent=5 // pred_check_branch
        %1422 = sbr.rel (%p1420) target = $region116
      $region115: #{gru_rnn_decode.1} parent=5 // pred_region
        %s1423 = ssub.s32 %s32, 2
      $region116: #{gru_rnn_decode.1} parent=5 // pred_fallthru
        _
    $region6: #{gru_rnn_decode.1} parent=1 // loop_footer
      %s36 = sadd.s32 1, %s32
    $region7: #{gru_rnn_decode.1} parent=1 // loop_footer_branch
      %31 = sbr.rel target = $region3
    $region8: #{gru_rnn_decode.1} parent=1 // loop_exit
      _
    %1424 = vsyncpa [#allocation5], 1
    %s1425 = scalar_lea.sflag [#allocation5], 1
    %1426 = vsyncpa %s1425, 1
    %1427 = vsyncpa [#allocation8], 1
    %1428 = vsyncpa [#allocation11], 1
    %1429 = vsyncpa [#allocation14], 1
    %1430 = vsyncpa [#allocation6], 1
    %s1431 = scalar_lea.sflag [#allocation6], 1
    %1432 = vsyncpa %s1431, 1

</llo_original>
